<compile_context>
chip_gen: v5e
topology: v5e:2x2
jax: 0.10.0
libtpu: 0.0.40
codegen_flags: <defaults>
</compile_context>

<pallas_src>
import functools

import jax
import jax.numpy as jnp
from jax.experimental import pallas as pl
from jax.experimental.pallas import tpu as pltpu


def _fs_kernel(rt_ref, p_ref, ids_ref, bias_ref,
               f1_ref, f2_ref, f3_ref, f4_ref,
               w1_ref, w2_ref, w3_ref, w4_ref,
               vp_ref, vf1_ref, vf2_ref, vf3_ref, vf4_ref, aux_ref,
               *, half_extents, channels):
    """One grid step: Bb batches x TN lanes.

    rt_ref    : SMEM (B, 12)           -- [vec(R); t] per batch (scalar reads)
    p_ref     : VMEM (Bb, 3, TN)  f32
    ids_ref   : VMEM (Bb, 1, TN)  i32
    bias_ref  : VMEM (Bb, C, 1)   f32  -- W_pose @ [vec(R); t] per batch
    f{k}_ref  : VMEM (Bb, C_k, TN)     -- per-scale features (bf16 preferred)
    w{k}_ref  : VMEM (C_k, C_k)   bf16 -- per-scale steering weights (resident)
    vp_ref    : VMEM (Bb, 3, TN)  f32  -- masked transformed points
    vf{k}_ref : VMEM (Bb, C_k, TN)     -- per-scale steered + masked features
    aux_ref   : VMEM (Bb, 2, TN)  i32  -- row 0: masked ids, row 1: validity flag
    """
    bb = p_ref.shape[0]
    tn = p_ref.shape[2]
    f_refs = (f1_ref, f2_ref, f3_ref, f4_ref)
    w_refs = (w1_ref, w2_ref, w3_ref, w4_ref)
    vf_refs = (vf1_ref, vf2_ref, vf3_ref, vf4_ref)

    # Load the small resident weights once per grid step (reused across batches).
    ws = [w[...] for w in w_refs]

    # Row-index planes for the fused (3,TN)/(2,TN) stores (pure VPU selects).
    rows3 = jax.lax.broadcasted_iota(jnp.int32, (3, tn), 0)
    rows2 = jax.lax.broadcasted_iota(jnp.int32, (2, tn), 0)

    for bi in range(bb):                    # static unroll over the batch sub-block
        b = pl.program_id(0) * bb + bi      # global batch index for SMEM pose reads

        p = p_ref[bi]                                     # (3, TN) f32
        p0, p1, p2 = p[0:1, :], p[1:2, :], p[2:3, :]

        # p' = R @ p + t : three unrolled scalar*vector FMAs, R/t read from SMEM.
        def transformed_row(i):
            return (rt_ref[b, 3 * i + 0] * p0
                    + rt_ref[b, 3 * i + 1] * p1
                    + rt_ref[b, 3 * i + 2] * p2
                    + rt_ref[b, 9 + i])

        pt0 = transformed_row(0)
        pt1 = transformed_row(1)
        pt2 = transformed_row(2)

        # |p'| once; per-scale validity flags are pure-VPU compares.
        a0, a1, a2 = jnp.abs(pt0), jnp.abs(pt1), jnp.abs(pt2)
        flags = [(a0 <= hx) & (a1 <= hy) & (a2 <= hz)     # (1, TN) bool each
                 for (hx, hy, hz) in half_extents]
        flag1 = flags[0]

        # Per-scale steering: dense bf16 MXU dot, f32 accumulation, f32 pose bias,
        # masked and written with a single dense store per scale.
        off = 0
        for k, c in enumerate(channels):
            fk = f_refs[k][bi].astype(jnp.bfloat16)       # (C_k, TN) bf16
            y = jnp.dot(ws[k], fk, preferred_element_type=jnp.float32)
            y = y + bias_ref[bi, off:off + c, :]          # f32 bias add
            vf_refs[k][bi] = jnp.where(flags[k], y, 0.0).astype(vf_refs[k].dtype)
            off += c

        # Masked transformed points: one fused (3, TN) store.
        pt = jnp.where(rows3 == 0, pt0, jnp.where(rows3 == 1, pt1, pt2))
        vp_ref[bi] = jnp.where(flag1, pt, 0.0)

        # Merged int32 output (masked ids + flag): one fused (2, TN) store.
        ids_row = jnp.where(flag1, ids_ref[bi], -1)       # (1, TN) i32
        aux_ref[bi] = jnp.where(rows2 == 0, ids_row, flag1.astype(jnp.int32))


class FeatureSteeringPallas:
    """JAX/Pallas equivalent of FeatureSteering(nn.Module)."""

    IRREPS = [(8, 8, 8, 8), (8, 8, 8, 8), (16, 16, 16, 16), (16, 16, 16, 16)]

    def __init__(self, unit_voxel_extent, voxel_num_limit, voxelization_mode,
                 scales, key):
        del voxelization_mode  # TODO(synk): unused in this synthetic implementation
        self.channels = tuple(sum(ir) for ir in self.IRREPS)       # 32, 32, 64, 64
        self.c_total = sum(self.channels)                          # 192

        # Per-scale voxel half-extents (Python floats -> scalar constants in-kernel).
        half_extents = []
        for scale in scales:
            su = [u * scale for u in unit_voxel_extent]
            sn = [int(v / scale) for v in voxel_num_limit]
            half_extents.append(
                tuple(float(su[i] * sn[i] / 2.0) for i in range(3)))
        self.half_extents = tuple(half_extents)

        # Deterministic per-scale steering weights (C_k, C_k + 12), split into a
        # bf16 feature weight (C_k, C_k) and an f32 pose weight (C_k, 12).
        keys = jax.random.split(key, 4)
        self.w_feat = []
        w_pose_blocks = []
        for k, c in enumerate(self.channels):
            w = (jax.random.normal(keys[k], (c, c + 12), jnp.float32)
                 / jnp.sqrt(float(c + 12)))
            self.w_feat.append(w[:, :c].astype(jnp.bfloat16))      # MXU-native dtype
            w_pose_blocks.append(w[:, c:])
        self.w_pose = jnp.concatenate(w_pose_blocks, axis=0)       # (C, 12) f32

    @staticmethod
    def _pick_tiles(batch, n_points):
        """Amortize the ~600-cycle grid-step overhead.

        Prefer a wide lane tile (up to 2048 lanes) when N allows it; otherwise
        block several batches per step.  Worst case per step (TN=2048, Bb=1):
        ~768 KiB feature in + 768 KiB feature out (bf16), double-buffered plus
        small tensors -> ~3.5 MiB, well inside v7x's 32 MiB scoped VMEM default.
        """
        tn = 128
        while tn * 2 <= min(n_points, 2048) and n_points % (tn * 2) == 0:
            tn *= 2
        bb = 1
        if tn < 512:
            for cand in (8, 4, 2):
                # Keep >= 2 steps on the parallel batch axis when possible so a
                # v7x chip can still use both TensorCores.
                if batch % cand == 0 and batch // cand >= 2:
                    bb = cand
                    break
        return bb, tn

    def __call__(self, p, f, ids, r, t):
        B, _, N = p.shape
        C = self.c_total
        assert N % 128 == 0, "point count must be a multiple of 128 lanes"
        bb, tn = self._pick_tiles(B, N)
        assert B % bb == 0 and N % tn == 0

        # Wrapper glue: only tiny tensors here -- no (B, C, N) copies.
        rt = jnp.concatenate([r.reshape(B, 9), t.reshape(B, 3)],
                             axis=1).astype(jnp.float32)            # (B, 12)
        bias = (rt @ self.w_pose.T).reshape(B, C, 1)                # (B, C, 1) f32
        ids3 = ids.reshape(B, 1, N).astype(jnp.int32)

        kernel = functools.partial(_fs_kernel,
                                   half_extents=self.half_extents,
                                   channels=self.channels)

        def blk(shape_tail):
            return pl.BlockSpec((bb,) + shape_tail, lambda i, j: (i, 0, j))

        in_specs = [
            pl.BlockSpec(memory_space=pltpu.MemorySpace.SMEM),      # rt (whole array)
            blk((3, tn)),                                           # p
            blk((1, tn)),                                           # ids
            pl.BlockSpec((bb, C, 1), lambda i, j: (i, 0, 0)),       # pose bias
        ]
        in_specs += [blk((c, tn)) for c in self.channels]           # f1..f4
        in_specs += [pl.BlockSpec((c, c), lambda i, j: (0, 0))
                     for c in self.channels]                        # w1..w4 (resident)

        out_specs = [blk((3, tn))]                                  # valid_points
        out_specs += [blk((c, tn)) for c in self.channels]          # valid_feats 1..4
        out_specs += [blk((2, tn))]                                 # ids + flag

        out_shape = [jax.ShapeDtypeStruct((B, 3, N), jnp.float32)]
        out_shape += [jax.ShapeDtypeStruct((B, c, N), f[k].dtype)
                      for k, c in enumerate(self.channels)]
        out_shape += [jax.ShapeDtypeStruct((B, 2, N), jnp.int32)]

        outs = pl.pallas_call(
            kernel,
            grid=(B // bb, N // tn),
            in_specs=in_specs,
            out_specs=out_specs,
            out_shape=out_shape,
            compiler_params=pltpu.CompilerParams(
                dimension_semantics=("parallel", "parallel")),
        )(rt, p, ids3, bias, *f, *self.w_feat)

        vp = outs[0]
        valid_feats = list(outs[1:5])
        aux = outs[5]
        valid_ids = aux[:, 0, :]
        flag = aux[:, 1, :].astype(jnp.bool_)
        return vp, valid_feats, valid_ids, flag


def _reference(module, p, f, ids, r, t):
    """Pure-JAX f32 reference of the same (masked, static-shape) semantics."""
    B = p.shape[0]
    hi = jax.lax.Precision.HIGHEST
    pt = jnp.einsum('bij,bjn->bin', r, p, precision=hi) + t[:, :, None]
    rt = jnp.concatenate([r.reshape(B, 9), t], axis=1)
    bias = rt @ module.w_pose.T                                     # (B, C)
    flags = []
    for (hx, hy, hz) in module.half_extents:
        flags.append((jnp.abs(pt[:, 0]) <= hx)
                     & (jnp.abs(pt[:, 1]) <= hy)
                     & (jnp.abs(pt[:, 2]) <= hz))
    flag1 = flags[0]
    vp = jnp.where(flag1[:, None, :], pt, 0.0)
    vfs, off = [], 0
    for k, c in enumerate(module.channels):
        y = jnp.einsum('cd,bdn->bcn',
                       module.w_feat[k].astype(jnp.float32),
                       f[k].astype(jnp.float32), precision=hi) + bias[:, off:off + c, None]
        vfs.append(jnp.where(flags[k][:, None, :], y, 0.0))
        off += c
    vid = jnp.where(flag1, ids, -1)
    return vp, vfs, vid, flag1


if __name__ == "__main__":
    key = jax.random.PRNGKey(0)
    k_p, k_f1, k_f2, k_f3, k_f4, k_r, k_t, k_w = jax.random.split(key, 8)

    B, N = 2, 128
    unit_voxel_extent = (0.01, 0.01, 0.01)
    voxel_num_limit = (40, 40, 40)
    scales = (1, 2, 4, 8)

    # inputs (channels-first, see layout comment at top); features arrive in bf16
    # as an upstream producer would emit them (halves HBM traffic on the dominant
    # tensor; the kernel accepts f32 too and casts in VMEM).
    p = jax.random.normal(k_p, (B, 3, N), jnp.float32) * 0.15
    f = [
        jax.random.normal(k_f1, (B, 32, N), jnp.float32).astype(jnp.bfloat16),
        jax.random.normal(k_f2, (B, 32, N), jnp.float32).astype(jnp.bfloat16),
        jax.random.normal(k_f3, (B, 64, N), jnp.float32).astype(jnp.bfloat16),
        jax.random.normal(k_f4, (B, 64, N), jnp.float32).astype(jnp.bfloat16),
    ]
    ids = jnp.tile(jnp.arange(N, dtype=jnp.int32)[None, :], (B, 1))
    # deterministic random rotations via QR
    r_raw = jax.random.normal(k_r, (B, 3, 3), jnp.float32)
    r, _ = jnp.linalg.qr(r_raw)
    t = jax.random.normal(k_t, (B, 3), jnp.float32) * 0.05

    module = FeatureSteeringPallas(unit_voxel_extent, voxel_num_limit,
                                   voxelization_mode="mean", scales=scales,
                                   key=k_w)

    valid_points, valid_feats, valid_ids, flag = module(p, f, ids, r, t)
    jax.block_until_ready((valid_points, valid_feats, valid_ids, flag))

    # shape / dtype checks
    assert valid_points.shape == (B, 3, N)
    assert [vf.shape for vf in valid_feats] == [(B, 32, N), (B, 32, N),
                                                (B, 64, N), (B, 64, N)]
    assert all(vf.dtype == jnp.bfloat16 for vf in valid_feats)
    assert valid_ids.shape == (B, N) and flag.shape == (B, N)

    # numerical check against a pure-JAX reference on the same bf16-rounded inputs
    ref_vp, ref_vfs, ref_vid, ref_flag = _reference(module, p, f, ids, r, t)
    assert bool(jnp.allclose(valid_points, ref_vp, atol=1e-5, rtol=1e-5))
    for got, want in zip(valid_feats, ref_vfs):
        # bf16 output rounding (~0.4% relative) dominates the error budget
        assert bool(jnp.allclose(got.astype(jnp.float32), want, atol=2e-2, rtol=2e-2))
    assert bool(jnp.all(valid_ids == ref_vid))
    assert bool(jnp.all(flag == ref_flag))

    print("KERNEL_OK")
</pallas_src>

<mosaic_0001>
module attributes {stable_mosaic.version = 11 : i64} {
  func.func @_fs_kernel(%arg0: i32, %arg1: i32, %arg2: memref<2x12xf32, #tpu.memory_space<smem>>, %arg3: memref<1x3x128xf32, #tpu.memory_space<vmem>>, %arg4: memref<1x1x128xi32, #tpu.memory_space<vmem>>, %arg5: memref<1x192x1xf32, #tpu.memory_space<vmem>>, %arg6: memref<1x32x128xbf16, #tpu.memory_space<vmem>>, %arg7: memref<1x32x128xbf16, #tpu.memory_space<vmem>>, %arg8: memref<1x64x128xbf16, #tpu.memory_space<vmem>>, %arg9: memref<1x64x128xbf16, #tpu.memory_space<vmem>>, %arg10: memref<32x32xbf16, #tpu.memory_space<vmem>>, %arg11: memref<32x32xbf16, #tpu.memory_space<vmem>>, %arg12: memref<64x64xbf16, #tpu.memory_space<vmem>>, %arg13: memref<64x64xbf16, #tpu.memory_space<vmem>>, %arg14: memref<1x3x128xf32, #tpu.memory_space<vmem>>, %arg15: memref<1x32x128xbf16, #tpu.memory_space<vmem>>, %arg16: memref<1x32x128xbf16, #tpu.memory_space<vmem>>, %arg17: memref<1x64x128xbf16, #tpu.memory_space<vmem>>, %arg18: memref<1x64x128xbf16, #tpu.memory_space<vmem>>, %arg19: memref<1x2x128xi32, #tpu.memory_space<vmem>>) attributes {dimension_semantics = [#tpu.dimension_semantics<parallel>, #tpu.dimension_semantics<parallel>], iteration_bounds = array<i64: 2, 1>, scalar_prefetch = 0 : i64, scratch_operands = 0 : i64, tpu.core_type = #tpu.core_type<tc>, window_params = [{transform_indices = @transform_0, window_bounds = array<i64: 2, 12>}, {transform_indices = @transform_1, window_bounds = array<i64: 1, 3, 128>}, {transform_indices = @transform_2, window_bounds = array<i64: 1, 1, 128>}, {transform_indices = @transform_3, window_bounds = array<i64: 1, 192, 1>}, {transform_indices = @transform_4, window_bounds = array<i64: 1, 32, 128>}, {transform_indices = @transform_5, window_bounds = array<i64: 1, 32, 128>}, {transform_indices = @transform_6, window_bounds = array<i64: 1, 64, 128>}, {transform_indices = @transform_7, window_bounds = array<i64: 1, 64, 128>}, {pipeline_mode = #tpu.pipeline_mode<synchronous>, transform_indices = @transform_8, window_bounds = array<i64: 32, 32>}, {pipeline_mode = #tpu.pipeline_mode<synchronous>, transform_indices = @transform_9, window_bounds = array<i64: 32, 32>}, {pipeline_mode = #tpu.pipeline_mode<synchronous>, transform_indices = @transform_10, window_bounds = array<i64: 64, 64>}, {pipeline_mode = #tpu.pipeline_mode<synchronous>, transform_indices = @transform_11, window_bounds = array<i64: 64, 64>}, {transform_indices = @transform_12, window_bounds = array<i64: 1, 3, 128>}, {transform_indices = @transform_13, window_bounds = array<i64: 1, 32, 128>}, {transform_indices = @transform_14, window_bounds = array<i64: 1, 32, 128>}, {transform_indices = @transform_15, window_bounds = array<i64: 1, 64, 128>}, {transform_indices = @transform_16, window_bounds = array<i64: 1, 64, 128>}, {transform_indices = @transform_17, window_bounds = array<i64: 1, 2, 128>}]} {
    %c0 = arith.constant 0 : index
    %c0_0 = arith.constant 0 : index
    %0 = vector.load %arg10[%c0, %c0_0] : memref<32x32xbf16, #tpu.memory_space<vmem>>, vector<32x32xbf16>
    %c0_1 = arith.constant 0 : index
    %c0_2 = arith.constant 0 : index
    %1 = vector.load %arg11[%c0_1, %c0_2] : memref<32x32xbf16, #tpu.memory_space<vmem>>, vector<32x32xbf16>
    %c0_3 = arith.constant 0 : index
    %c0_4 = arith.constant 0 : index
    %2 = vector.load %arg12[%c0_3, %c0_4] : memref<64x64xbf16, #tpu.memory_space<vmem>>, vector<64x64xbf16>
    %c0_5 = arith.constant 0 : index
    %c0_6 = arith.constant 0 : index
    %3 = vector.load %arg13[%c0_5, %c0_6] : memref<64x64xbf16, #tpu.memory_space<vmem>>, vector<64x64xbf16>
    %4 = tpu.iota {dimensions = array<i32: 0>} : vector<3x128xi32>
    %5 = tpu.iota {dimensions = array<i32: 0>} : vector<2x128xi32>
    %c1_i32 = arith.constant 1 : i32
    %6 = arith.muli %arg0, %c1_i32 : i32
    %c0_i32 = arith.constant 0 : i32
    %7 = arith.addi %6, %c0_i32 : i32
    %c0_7 = arith.constant 0 : index
    %c0_8 = arith.constant 0 : index
    %c0_9 = arith.constant 0 : index
    %8 = vector.load %arg3[%c0_7, %c0_8, %c0_9] : memref<1x3x128xf32, #tpu.memory_space<vmem>>, vector<1x3x128xf32>
    %9 = vector.shape_cast %8 : vector<1x3x128xf32> to vector<3x128xf32>
    %10 = vector.extract_strided_slice %9 {offsets = [0, 0], sizes = [1, 128], strides = [1, 1]} : vector<3x128xf32> to vector<1x128xf32>
    %11 = vector.extract_strided_slice %9 {offsets = [1, 0], sizes = [1, 128], strides = [1, 1]} : vector<3x128xf32> to vector<1x128xf32>
    %12 = vector.extract_strided_slice %9 {offsets = [2, 0], sizes = [1, 128], strides = [1, 1]} : vector<3x128xf32> to vector<1x128xf32>
    %13 = arith.index_cast %7 : i32 to index
    %c0_10 = arith.constant 0 : index
    %14 = memref.load %arg2[%13, %c0_10] : memref<2x12xf32, #tpu.memory_space<smem>>
    %15 = vector.broadcast %14 : f32 to vector<1x128xf32>
    %16 = arith.mulf %15, %10 : vector<1x128xf32>
    %17 = arith.index_cast %7 : i32 to index
    %c1 = arith.constant 1 : index
    %18 = memref.load %arg2[%17, %c1] : memref<2x12xf32, #tpu.memory_space<smem>>
    %19 = vector.broadcast %18 : f32 to vector<1x128xf32>
    %20 = arith.mulf %19, %11 : vector<1x128xf32>
    %21 = arith.addf %16, %20 : vector<1x128xf32>
    %22 = arith.index_cast %7 : i32 to index
    %c2 = arith.constant 2 : index
    %23 = memref.load %arg2[%22, %c2] : memref<2x12xf32, #tpu.memory_space<smem>>
    %24 = vector.broadcast %23 : f32 to vector<1x128xf32>
    %25 = arith.mulf %24, %12 : vector<1x128xf32>
    %26 = arith.addf %21, %25 : vector<1x128xf32>
    %27 = arith.index_cast %7 : i32 to index
    %c9 = arith.constant 9 : index
    %28 = memref.load %arg2[%27, %c9] : memref<2x12xf32, #tpu.memory_space<smem>>
    %29 = vector.broadcast %28 : f32 to vector<1x128xf32>
    %30 = arith.addf %26, %29 : vector<1x128xf32>
    %31 = arith.index_cast %7 : i32 to index
    %c3 = arith.constant 3 : index
    %32 = memref.load %arg2[%31, %c3] : memref<2x12xf32, #tpu.memory_space<smem>>
    %33 = vector.broadcast %32 : f32 to vector<1x128xf32>
    %34 = arith.mulf %33, %10 : vector<1x128xf32>
    %35 = arith.index_cast %7 : i32 to index
    %c4 = arith.constant 4 : index
    %36 = memref.load %arg2[%35, %c4] : memref<2x12xf32, #tpu.memory_space<smem>>
    %37 = vector.broadcast %36 : f32 to vector<1x128xf32>
    %38 = arith.mulf %37, %11 : vector<1x128xf32>
    %39 = arith.addf %34, %38 : vector<1x128xf32>
    %40 = arith.index_cast %7 : i32 to index
    %c5 = arith.constant 5 : index
    %41 = memref.load %arg2[%40, %c5] : memref<2x12xf32, #tpu.memory_space<smem>>
    %42 = vector.broadcast %41 : f32 to vector<1x128xf32>
    %43 = arith.mulf %42, %12 : vector<1x128xf32>
    %44 = arith.addf %39, %43 : vector<1x128xf32>
    %45 = arith.index_cast %7 : i32 to index
    %c10 = arith.constant 10 : index
    %46 = memref.load %arg2[%45, %c10] : memref<2x12xf32, #tpu.memory_space<smem>>
    %47 = vector.broadcast %46 : f32 to vector<1x128xf32>
    %48 = arith.addf %44, %47 : vector<1x128xf32>
    %49 = arith.index_cast %7 : i32 to index
    %c6 = arith.constant 6 : index
    %50 = memref.load %arg2[%49, %c6] : memref<2x12xf32, #tpu.memory_space<smem>>
    %51 = vector.broadcast %50 : f32 to vector<1x128xf32>
    %52 = arith.mulf %51, %10 : vector<1x128xf32>
    %53 = arith.index_cast %7 : i32 to index
    %c7 = arith.constant 7 : index
    %54 = memref.load %arg2[%53, %c7] : memref<2x12xf32, #tpu.memory_space<smem>>
    %55 = vector.broadcast %54 : f32 to vector<1x128xf32>
    %56 = arith.mulf %55, %11 : vector<1x128xf32>
    %57 = arith.addf %52, %56 : vector<1x128xf32>
    %58 = arith.index_cast %7 : i32 to index
    %c8 = arith.constant 8 : index
    %59 = memref.load %arg2[%58, %c8] : memref<2x12xf32, #tpu.memory_space<smem>>
    %60 = vector.broadcast %59 : f32 to vector<1x128xf32>
    %61 = arith.mulf %60, %12 : vector<1x128xf32>
    %62 = arith.addf %57, %61 : vector<1x128xf32>
    %63 = arith.index_cast %7 : i32 to index
    %c11 = arith.constant 11 : index
    %64 = memref.load %arg2[%63, %c11] : memref<2x12xf32, #tpu.memory_space<smem>>
    %65 = vector.broadcast %64 : f32 to vector<1x128xf32>
    %66 = arith.addf %62, %65 : vector<1x128xf32>
    %67 = math.absf %30 : vector<1x128xf32>
    %68 = math.absf %48 : vector<1x128xf32>
    %69 = math.absf %66 : vector<1x128xf32>
    %cst = arith.constant 2.000000e-01 : f32
    %70 = vector.broadcast %cst : f32 to vector<1x128xf32>
    %71 = arith.cmpf ole, %67, %70 : vector<1x128xf32>
    %cst_11 = arith.constant 2.000000e-01 : f32
    %72 = vector.broadcast %cst_11 : f32 to vector<1x128xf32>
    %73 = arith.cmpf ole, %68, %72 : vector<1x128xf32>
    %74 = arith.andi %71, %73 : vector<1x128xi1>
    %cst_12 = arith.constant 2.000000e-01 : f32
    %75 = vector.broadcast %cst_12 : f32 to vector<1x128xf32>
    %76 = arith.cmpf ole, %69, %75 : vector<1x128xf32>
    %77 = arith.andi %74, %76 : vector<1x128xi1>
    %cst_13 = arith.constant 2.000000e-01 : f32
    %78 = vector.broadcast %cst_13 : f32 to vector<1x128xf32>
    %79 = arith.cmpf ole, %67, %78 : vector<1x128xf32>
    %cst_14 = arith.constant 2.000000e-01 : f32
    %80 = vector.broadcast %cst_14 : f32 to vector<1x128xf32>
    %81 = arith.cmpf ole, %68, %80 : vector<1x128xf32>
    %82 = arith.andi %79, %81 : vector<1x128xi1>
    %cst_15 = arith.constant 2.000000e-01 : f32
    %83 = vector.broadcast %cst_15 : f32 to vector<1x128xf32>
    %84 = arith.cmpf ole, %69, %83 : vector<1x128xf32>
    %85 = arith.andi %82, %84 : vector<1x128xi1>
    %cst_16 = arith.constant 2.000000e-01 : f32
    %86 = vector.broadcast %cst_16 : f32 to vector<1x128xf32>
    %87 = arith.cmpf ole, %67, %86 : vector<1x128xf32>
    %cst_17 = arith.constant 2.000000e-01 : f32
    %88 = vector.broadcast %cst_17 : f32 to vector<1x128xf32>
    %89 = arith.cmpf ole, %68, %88 : vector<1x128xf32>
    %90 = arith.andi %87, %89 : vector<1x128xi1>
    %cst_18 = arith.constant 2.000000e-01 : f32
    %91 = vector.broadcast %cst_18 : f32 to vector<1x128xf32>
    %92 = arith.cmpf ole, %69, %91 : vector<1x128xf32>
    %93 = arith.andi %90, %92 : vector<1x128xi1>
    %cst_19 = arith.constant 2.000000e-01 : f32
    %94 = vector.broadcast %cst_19 : f32 to vector<1x128xf32>
    %95 = arith.cmpf ole, %67, %94 : vector<1x128xf32>
    %cst_20 = arith.constant 2.000000e-01 : f32
    %96 = vector.broadcast %cst_20 : f32 to vector<1x128xf32>
    %97 = arith.cmpf ole, %68, %96 : vector<1x128xf32>
    %98 = arith.andi %95, %97 : vector<1x128xi1>
    %cst_21 = arith.constant 2.000000e-01 : f32
    %99 = vector.broadcast %cst_21 : f32 to vector<1x128xf32>
    %100 = arith.cmpf ole, %69, %99 : vector<1x128xf32>
    %101 = arith.andi %98, %100 : vector<1x128xi1>
    %c0_22 = arith.constant 0 : index
    %c0_23 = arith.constant 0 : index
    %c0_24 = arith.constant 0 : index
    %102 = vector.load %arg6[%c0_22, %c0_23, %c0_24] : memref<1x32x128xbf16, #tpu.memory_space<vmem>>, vector<1x32x128xbf16>
    %103 = vector.shape_cast %102 : vector<1x32x128xbf16> to vector<32x128xbf16>
    %cst_25 = arith.constant dense<0.000000e+00> : vector<32x128xf32>
    %104 = tpu.matmul %0, %103, %cst_25 {dimension_numbers = #tpu.dot_dimension_numbers<[1], [0], [0], [1], [0, 0, 1, 1], [], []>} : vector<32x32xbf16>, vector<32x128xbf16>, vector<32x128xf32> -> vector<32x128xf32>
    %c0_26 = arith.constant 0 : index
    %c0_27 = arith.constant 0 : index
    %c0_28 = arith.constant 0 : index
    %105 = vector.load %arg5[%c0_26, %c0_27, %c0_28] : memref<1x192x1xf32, #tpu.memory_space<vmem>>, vector<1x32x1xf32>
    %106 = vector.shape_cast %105 : vector<1x32x1xf32> to vector<32x1xf32>
    %107 = vector.broadcast %106 : vector<32x1xf32> to vector<32x128xf32>
    %108 = arith.addf %104, %107 : vector<32x128xf32>
    %cst_29 = arith.constant 0.000000e+00 : f32
    %109 = vector.shape_cast %77 : vector<1x128xi1> to vector<1x128xi1>
    %110 = vector.broadcast %109 : vector<1x128xi1> to vector<32x128xi1>
    %111 = vector.broadcast %cst_29 : f32 to vector<32x128xf32>
    %112 = arith.select %110, %108, %111 : vector<32x128xi1>, vector<32x128xf32>
    %113 = arith.truncf %112 : vector<32x128xf32> to vector<32x128xbf16>
    %c0_30 = arith.constant 0 : index
    %c0_31 = arith.constant 0 : index
    %c0_32 = arith.constant 0 : index
    %114 = vector.load %arg15[%c0_30, %c0_31, %c0_32] : memref<1x32x128xbf16, #tpu.memory_space<vmem>>, vector<1x32x128xbf16>
    %115 = vector.shape_cast %114 : vector<1x32x128xbf16> to vector<32x128xbf16>
    %116 = vector.shape_cast %113 : vector<32x128xbf16> to vector<1x32x128xbf16>
    tpu.vector_store %arg15[%c0_30, %c0_31, %c0_32], %116 {strides = array<i32>} : memref<1x32x128xbf16, #tpu.memory_space<vmem>>, vector<1x32x128xbf16>,
    %c0_33 = arith.constant 0 : index
    %c0_34 = arith.constant 0 : index
    %c0_35 = arith.constant 0 : index
    %117 = vector.load %arg7[%c0_33, %c0_34, %c0_35] : memref<1x32x128xbf16, #tpu.memory_space<vmem>>, vector<1x32x128xbf16>
    %118 = vector.shape_cast %117 : vector<1x32x128xbf16> to vector<32x128xbf16>
    %cst_36 = arith.constant dense<0.000000e+00> : vector<32x128xf32>
    %119 = tpu.matmul %1, %118, %cst_36 {dimension_numbers = #tpu.dot_dimension_numbers<[1], [0], [0], [1], [0, 0, 1, 1], [], []>} : vector<32x32xbf16>, vector<32x128xbf16>, vector<32x128xf32> -> vector<32x128xf32>
    %c0_37 = arith.constant 0 : index
    %c32 = arith.constant 32 : index
    %c0_38 = arith.constant 0 : index
    %120 = vector.load %arg5[%c0_37, %c32, %c0_38] : memref<1x192x1xf32, #tpu.memory_space<vmem>>, vector<1x32x1xf32>
    %121 = vector.shape_cast %120 : vector<1x32x1xf32> to vector<32x1xf32>
    %122 = vector.broadcast %121 : vector<32x1xf32> to vector<32x128xf32>
    %123 = arith.addf %119, %122 : vector<32x128xf32>
    %cst_39 = arith.constant 0.000000e+00 : f32
    %124 = vector.shape_cast %85 : vector<1x128xi1> to vector<1x128xi1>
    %125 = vector.broadcast %124 : vector<1x128xi1> to vector<32x128xi1>
    %126 = vector.broadcast %cst_39 : f32 to vector<32x128xf32>
    %127 = arith.select %125, %123, %126 : vector<32x128xi1>, vector<32x128xf32>
    %128 = arith.truncf %127 : vector<32x128xf32> to vector<32x128xbf16>
    %c0_40 = arith.constant 0 : index
    %c0_41 = arith.constant 0 : index
    %c0_42 = arith.constant 0 : index
    %129 = vector.load %arg16[%c0_40, %c0_41, %c0_42] : memref<1x32x128xbf16, #tpu.memory_space<vmem>>, vector<1x32x128xbf16>
    %130 = vector.shape_cast %129 : vector<1x32x128xbf16> to vector<32x128xbf16>
    %131 = vector.shape_cast %128 : vector<32x128xbf16> to vector<1x32x128xbf16>
    tpu.vector_store %arg16[%c0_40, %c0_41, %c0_42], %131 {strides = array<i32>} : memref<1x32x128xbf16, #tpu.memory_space<vmem>>, vector<1x32x128xbf16>,
    %c0_43 = arith.constant 0 : index
    %c0_44 = arith.constant 0 : index
    %c0_45 = arith.constant 0 : index
    %132 = vector.load %arg8[%c0_43, %c0_44, %c0_45] : memref<1x64x128xbf16, #tpu.memory_space<vmem>>, vector<1x64x128xbf16>
    %133 = vector.shape_cast %132 : vector<1x64x128xbf16> to vector<64x128xbf16>
    %cst_46 = arith.constant dense<0.000000e+00> : vector<64x128xf32>
    %134 = tpu.matmul %2, %133, %cst_46 {dimension_numbers = #tpu.dot_dimension_numbers<[1], [0], [0], [1], [0, 0, 1, 1], [], []>} : vector<64x64xbf16>, vector<64x128xbf16>, vector<64x128xf32> -> vector<64x128xf32>
    %c0_47 = arith.constant 0 : index
    %c64 = arith.constant 64 : index
    %c0_48 = arith.constant 0 : index
    %135 = vector.load %arg5[%c0_47, %c64, %c0_48] : memref<1x192x1xf32, #tpu.memory_space<vmem>>, vector<1x64x1xf32>
    %136 = vector.shape_cast %135 : vector<1x64x1xf32> to vector<64x1xf32>
    %137 = vector.broadcast %136 : vector<64x1xf32> to vector<64x128xf32>
    %138 = arith.addf %134, %137 : vector<64x128xf32>
    %cst_49 = arith.constant 0.000000e+00 : f32
    %139 = vector.shape_cast %93 : vector<1x128xi1> to vector<1x128xi1>
    %140 = vector.broadcast %139 : vector<1x128xi1> to vector<64x128xi1>
    %141 = vector.broadcast %cst_49 : f32 to vector<64x128xf32>
    %142 = arith.select %140, %138, %141 : vector<64x128xi1>, vector<64x128xf32>
    %143 = arith.truncf %142 : vector<64x128xf32> to vector<64x128xbf16>
    %c0_50 = arith.constant 0 : index
    %c0_51 = arith.constant 0 : index
    %c0_52 = arith.constant 0 : index
    %144 = vector.load %arg17[%c0_50, %c0_51, %c0_52] : memref<1x64x128xbf16, #tpu.memory_space<vmem>>, vector<1x64x128xbf16>
    %145 = vector.shape_cast %144 : vector<1x64x128xbf16> to vector<64x128xbf16>
    %146 = vector.shape_cast %143 : vector<64x128xbf16> to vector<1x64x128xbf16>
    tpu.vector_store %arg17[%c0_50, %c0_51, %c0_52], %146 {strides = array<i32>} : memref<1x64x128xbf16, #tpu.memory_space<vmem>>, vector<1x64x128xbf16>,
    %c0_53 = arith.constant 0 : index
    %c0_54 = arith.constant 0 : index
    %c0_55 = arith.constant 0 : index
    %147 = vector.load %arg9[%c0_53, %c0_54, %c0_55] : memref<1x64x128xbf16, #tpu.memory_space<vmem>>, vector<1x64x128xbf16>
    %148 = vector.shape_cast %147 : vector<1x64x128xbf16> to vector<64x128xbf16>
    %cst_56 = arith.constant dense<0.000000e+00> : vector<64x128xf32>
    %149 = tpu.matmul %3, %148, %cst_56 {dimension_numbers = #tpu.dot_dimension_numbers<[1], [0], [0], [1], [0, 0, 1, 1], [], []>} : vector<64x64xbf16>, vector<64x128xbf16>, vector<64x128xf32> -> vector<64x128xf32>
    %c0_57 = arith.constant 0 : index
    %c128 = arith.constant 128 : index
    %c0_58 = arith.constant 0 : index
    %150 = vector.load %arg5[%c0_57, %c128, %c0_58] : memref<1x192x1xf32, #tpu.memory_space<vmem>>, vector<1x64x1xf32>
    %151 = vector.shape_cast %150 : vector<1x64x1xf32> to vector<64x1xf32>
    %152 = vector.broadcast %151 : vector<64x1xf32> to vector<64x128xf32>
    %153 = arith.addf %149, %152 : vector<64x128xf32>
    %cst_59 = arith.constant 0.000000e+00 : f32
    %154 = vector.shape_cast %101 : vector<1x128xi1> to vector<1x128xi1>
    %155 = vector.broadcast %154 : vector<1x128xi1> to vector<64x128xi1>
    %156 = vector.broadcast %cst_59 : f32 to vector<64x128xf32>
    %157 = arith.select %155, %153, %156 : vector<64x128xi1>, vector<64x128xf32>
    %158 = arith.truncf %157 : vector<64x128xf32> to vector<64x128xbf16>
    %c0_60 = arith.constant 0 : index
    %c0_61 = arith.constant 0 : index
    %c0_62 = arith.constant 0 : index
    %159 = vector.load %arg18[%c0_60, %c0_61, %c0_62] : memref<1x64x128xbf16, #tpu.memory_space<vmem>>, vector<1x64x128xbf16>
    %160 = vector.shape_cast %159 : vector<1x64x128xbf16> to vector<64x128xbf16>
    %161 = vector.shape_cast %158 : vector<64x128xbf16> to vector<1x64x128xbf16>
    tpu.vector_store %arg18[%c0_60, %c0_61, %c0_62], %161 {strides = array<i32>} : memref<1x64x128xbf16, #tpu.memory_space<vmem>>, vector<1x64x128xbf16>,
    %c0_i32_63 = arith.constant 0 : i32
    %162 = vector.broadcast %c0_i32_63 : i32 to vector<3x128xi32>
    %163 = arith.cmpi eq, %4, %162 : vector<3x128xi32>
    %c1_i32_64 = arith.constant 1 : i32
    %164 = vector.broadcast %c1_i32_64 : i32 to vector<3x128xi32>
    %165 = arith.cmpi eq, %4, %164 : vector<3x128xi32>
    %166 = vector.shape_cast %48 : vector<1x128xf32> to vector<1x128xf32>
    %167 = vector.broadcast %166 : vector<1x128xf32> to vector<3x128xf32>
    %168 = vector.shape_cast %66 : vector<1x128xf32> to vector<1x128xf32>
    %169 = vector.broadcast %168 : vector<1x128xf32> to vector<3x128xf32>
    %170 = arith.select %165, %167, %169 : vector<3x128xi1>, vector<3x128xf32>
    %171 = vector.shape_cast %30 : vector<1x128xf32> to vector<1x128xf32>
    %172 = vector.broadcast %171 : vector<1x128xf32> to vector<3x128xf32>
    %173 = arith.select %163, %172, %170 : vector<3x128xi1>, vector<3x128xf32>
    %cst_65 = arith.constant 0.000000e+00 : f32
    %174 = vector.shape_cast %77 : vector<1x128xi1> to vector<1x128xi1>
    %175 = vector.broadcast %174 : vector<1x128xi1> to vector<3x128xi1>
    %176 = vector.broadcast %cst_65 : f32 to vector<3x128xf32>
    %177 = arith.select %175, %173, %176 : vector<3x128xi1>, vector<3x128xf32>
    %c0_66 = arith.constant 0 : index
    %c0_67 = arith.constant 0 : index
    %c0_68 = arith.constant 0 : index
    %178 = vector.load %arg14[%c0_66, %c0_67, %c0_68] : memref<1x3x128xf32, #tpu.memory_space<vmem>>, vector<1x3x128xf32>
    %179 = vector.shape_cast %178 : vector<1x3x128xf32> to vector<3x128xf32>
    %180 = vector.shape_cast %177 : vector<3x128xf32> to vector<1x3x128xf32>
    tpu.vector_store %arg14[%c0_66, %c0_67, %c0_68], %180 {strides = array<i32>} : memref<1x3x128xf32, #tpu.memory_space<vmem>>, vector<1x3x128xf32>,
    %c0_69 = arith.constant 0 : index
    %c0_70 = arith.constant 0 : index
    %c0_71 = arith.constant 0 : index
    %181 = vector.load %arg4[%c0_69, %c0_70, %c0_71] : memref<1x1x128xi32, #tpu.memory_space<vmem>>, vector<1x1x128xi32>
    %182 = vector.shape_cast %181 : vector<1x1x128xi32> to vector<1x128xi32>
    %c-1_i32 = arith.constant -1 : i32
    %183 = vector.broadcast %c-1_i32 : i32 to vector<1x128xi32>
    %184 = arith.select %77, %182, %183 : vector<1x128xi1>, vector<1x128xi32>
    %c0_i32_72 = arith.constant 0 : i32
    %185 = vector.broadcast %c0_i32_72 : i32 to vector<2x128xi32>
    %186 = arith.cmpi eq, %5, %185 : vector<2x128xi32>
    %187 = arith.extui %77 : vector<1x128xi1> to vector<1x128xi32>
    %188 = vector.shape_cast %184 : vector<1x128xi32> to vector<1x128xi32>
    %189 = vector.broadcast %188 : vector<1x128xi32> to vector<2x128xi32>
    %190 = vector.shape_cast %187 : vector<1x128xi32> to vector<1x128xi32>
    %191 = vector.broadcast %190 : vector<1x128xi32> to vector<2x128xi32>
    %192 = arith.select %186, %189, %191 : vector<2x128xi1>, vector<2x128xi32>
    %c0_73 = arith.constant 0 : index
    %c0_74 = arith.constant 0 : index
    %c0_75 = arith.constant 0 : index
    %193 = vector.load %arg19[%c0_73, %c0_74, %c0_75] : memref<1x2x128xi32, #tpu.memory_space<vmem>>, vector<1x2x128xi32>
    %194 = vector.shape_cast %193 : vector<1x2x128xi32> to vector<2x128xi32>
    %195 = vector.shape_cast %192 : vector<2x128xi32> to vector<1x2x128xi32>
    tpu.vector_store %arg19[%c0_73, %c0_74, %c0_75], %195 {strides = array<i32>} : memref<1x2x128xi32, #tpu.memory_space<vmem>>, vector<1x2x128xi32>,
    return
  }
  func.func @transform_0(%arg0: i32, %arg1: i32) -> (i32, i32) {
    %c0_i32 = arith.constant 0 : i32
    %c0_i32_0 = arith.constant 0 : i32
    %c0_i32_1 = arith.constant 0 : i32
    return %c0_i32, %c0_i32_0 : i32, i32
  }
  func.func @transform_1(%arg0: i32, %arg1: i32) -> (i32, i32, i32) {
    %c0_i32 = arith.constant 0 : i32
    %c0_i32_0 = arith.constant 0 : i32
    return %arg0, %c0_i32, %arg1 : i32, i32, i32
  }
  func.func @transform_2(%arg0: i32, %arg1: i32) -> (i32, i32, i32) {
    %c0_i32 = arith.constant 0 : i32
    %c0_i32_0 = arith.constant 0 : i32
    return %arg0, %c0_i32, %arg1 : i32, i32, i32
  }
  func.func @transform_3(%arg0: i32, %arg1: i32) -> (i32, i32, i32) {
    %c0_i32 = arith.constant 0 : i32
    %c0_i32_0 = arith.constant 0 : i32
    %c0_i32_1 = arith.constant 0 : i32
    return %arg0, %c0_i32, %c0_i32_0 : i32, i32, i32
  }
  func.func @transform_4(%arg0: i32, %arg1: i32) -> (i32, i32, i32) {
    %c0_i32 = arith.constant 0 : i32
    %c0_i32_0 = arith.constant 0 : i32
    return %arg0, %c0_i32, %arg1 : i32, i32, i32
  }
  func.func @transform_5(%arg0: i32, %arg1: i32) -> (i32, i32, i32) {
    %c0_i32 = arith.constant 0 : i32
    %c0_i32_0 = arith.constant 0 : i32
    return %arg0, %c0_i32, %arg1 : i32, i32, i32
  }
  func.func @transform_6(%arg0: i32, %arg1: i32) -> (i32, i32, i32) {
    %c0_i32 = arith.constant 0 : i32
    %c0_i32_0 = arith.constant 0 : i32
    return %arg0, %c0_i32, %arg1 : i32, i32, i32
  }
  func.func @transform_7(%arg0: i32, %arg1: i32) -> (i32, i32, i32) {
    %c0_i32 = arith.constant 0 : i32
    %c0_i32_0 = arith.constant 0 : i32
    return %arg0, %c0_i32, %arg1 : i32, i32, i32
  }
  func.func @transform_8(%arg0: i32, %arg1: i32) -> (i32, i32) {
    %c0_i32 = arith.constant 0 : i32
    %c0_i32_0 = arith.constant 0 : i32
    %c0_i32_1 = arith.constant 0 : i32
    return %c0_i32, %c0_i32_0 : i32, i32
  }
  func.func @transform_9(%arg0: i32, %arg1: i32) -> (i32, i32) {
    %c0_i32 = arith.constant 0 : i32
    %c0_i32_0 = arith.constant 0 : i32
    %c0_i32_1 = arith.constant 0 : i32
    return %c0_i32, %c0_i32_0 : i32, i32
  }
  func.func @transform_10(%arg0: i32, %arg1: i32) -> (i32, i32) {
    %c0_i32 = arith.constant 0 : i32
    %c0_i32_0 = arith.constant 0 : i32
    %c0_i32_1 = arith.constant 0 : i32
    return %c0_i32, %c0_i32_0 : i32, i32
  }
  func.func @transform_11(%arg0: i32, %arg1: i32) -> (i32, i32) {
    %c0_i32 = arith.constant 0 : i32
    %c0_i32_0 = arith.constant 0 : i32
    %c0_i32_1 = arith.constant 0 : i32
    return %c0_i32, %c0_i32_0 : i32, i32
  }
  func.func @transform_12(%arg0: i32, %arg1: i32) -> (i32, i32, i32) {
    %c0_i32 = arith.constant 0 : i32
    %c0_i32_0 = arith.constant 0 : i32
    return %arg0, %c0_i32, %arg1 : i32, i32, i32
  }
  func.func @transform_13(%arg0: i32, %arg1: i32) -> (i32, i32, i32) {
    %c0_i32 = arith.constant 0 : i32
    %c0_i32_0 = arith.constant 0 : i32
    return %arg0, %c0_i32, %arg1 : i32, i32, i32
  }
  func.func @transform_14(%arg0: i32, %arg1: i32) -> (i32, i32, i32) {
    %c0_i32 = arith.constant 0 : i32
    %c0_i32_0 = arith.constant 0 : i32
    return %arg0, %c0_i32, %arg1 : i32, i32, i32
  }
  func.func @transform_15(%arg0: i32, %arg1: i32) -> (i32, i32, i32) {
    %c0_i32 = arith.constant 0 : i32
    %c0_i32_0 = arith.constant 0 : i32
    return %arg0, %c0_i32, %arg1 : i32, i32, i32
  }
  func.func @transform_16(%arg0: i32, %arg1: i32) -> (i32, i32, i32) {
    %c0_i32 = arith.constant 0 : i32
    %c0_i32_0 = arith.constant 0 : i32
    return %arg0, %c0_i32, %arg1 : i32, i32, i32
  }
  func.func @transform_17(%arg0: i32, %arg1: i32) -> (i32, i32, i32) {
    %c0_i32 = arith.constant 0 : i32
    %c0_i32_0 = arith.constant 0 : i32
    return %arg0, %c0_i32, %arg1 : i32, i32, i32
  }
}

</mosaic_0001>

<llo_original>
// kernel: tpu_custom_call.1
$region0: #{tpu_custom_call.1}
  #allocation0 [shape = 'u32[]', space=smem, size = 0x4, offset = 0x4, fixed_abs, tag = 'smem constant byte address 0x4 - core index']
  #allocation1 [shape = 'u32[72,128]{1,0:T(1,128)}', space=vmem, size = 0x9000, scoped, tag = 'internal scratch']
  %s0 = inlined_call_operand.vmem [shape: f32[2,12], index: 0, kind: input, shape index: {}]
  %s1 = inlined_call_operand.vmem [shape: f32[2,3,128], index: 1, kind: input, shape index: {}]
  %s2 = inlined_call_operand.vmem [shape: s32[2,1,128], index: 2, kind: input, shape index: {}]
  %s3 = inlined_call_operand.vmem [shape: f32[2,192,1], index: 3, kind: input, shape index: {}]
  %s4 = inlined_call_operand.vmem [shape: bf16[2,32,128], index: 4, kind: input, shape index: {}]
  %s5 = inlined_call_operand.vmem [shape: bf16[2,32,128], index: 5, kind: input, shape index: {}]
  %s6 = inlined_call_operand.vmem [shape: bf16[2,64,128], index: 6, kind: input, shape index: {}]
  %s7 = inlined_call_operand.vmem [shape: bf16[2,64,128], index: 7, kind: input, shape index: {}]
  %s8 = inlined_call_operand.vmem [shape: bf16[32,32], index: 8, kind: input, shape index: {}]
  %s9 = inlined_call_operand.vmem [shape: bf16[32,32], index: 9, kind: input, shape index: {}]
  %s10 = inlined_call_operand.vmem [shape: bf16[64,64], index: 10, kind: input, shape index: {}]
  %s11 = inlined_call_operand.vmem [shape: bf16[64,64], index: 11, kind: input, shape index: {}]
  %s12 = inlined_call_operand.vmem [shape: f32[2,3,128], index: 12, kind: output, shape index: {0}]
  %s13 = inlined_call_operand.hbm [shape: bf16[2,32,128], index: 13, kind: output, shape index: {1}]
  %s14 = inlined_call_operand.hbm [shape: bf16[2,32,128], index: 14, kind: output, shape index: {2}]
  %s15 = inlined_call_operand.hbm [shape: bf16[2,64,128], index: 15, kind: output, shape index: {3}]
  %s16 = inlined_call_operand.hbm [shape: bf16[2,64,128], index: 16, kind: output, shape index: {4}]
  %s17 = inlined_call_operand.hbm [shape: s32[2,2,128], index: 17, kind: output, shape index: {5}]
  %18 = xla_tuple %s12, %s13, %s14, %s15, %s16, %s17
  %s19 = sld [smem:[#allocation0]]
  $region125: #{tpu_custom_call.1} parent=0
    _
  %s21 = ssub.s32 1, %s19
  %s22 = scalar_select 0, %s21, %s19
  $region1: #{tpu_custom_call.1} parent=0
    #allocation2 [shape = 'u8[1024]{0}', space=smem, size = 0x400, scoped, tag = 'input window, operand 0, single buffered']
    #allocation3 [shape = 's32[2]{0}', space=sflag, size = 0x8, scoped, tag = 'scoped memory for tpu_custom_call.1']
    #allocation4 [shape = 's32[2]{0}', space=sflag, size = 0x8, scoped, tag = 'scoped memory for tpu_custom_call.1']
    #allocation5 [shape = 'u8[16384]{0}', space=vmem, size = 0x4000, scoped, tag = 'output window, operand 1']
    #allocation6 [shape = 'u8[16384]{0}', space=vmem, size = 0x4000, scoped, tag = 'output window, operand 2']
    #allocation7 [shape = 's32[2]{0}', space=sflag, size = 0x8, scoped, tag = 'scoped memory for tpu_custom_call.1']
    #allocation8 [shape = 'u8[32768]{0}', space=vmem, size = 0x8000, scoped, tag = 'output window, operand 3']
    #allocation9 [shape = 'u8[32768]{0}', space=vmem, size = 0x8000, scoped, tag = 'output window, operand 4']
    #allocation10 [shape = 's32[2]{0}', space=sflag, size = 0x8, scoped, tag = 'scoped memory for tpu_custom_call.1']
    #allocation11 [shape = 'u8[2048]{0}', space=vmem, size = 0x800, scoped, tag = 'output window, operand 5']
    %23 = vsyncpa [#allocation4], 0
    %24 = vsyncpa [#allocation3], 0
    %s25 = scalar_lea.sflag [#allocation3], 1
    %26 = vsyncpa %s25, 0
    %27 = vsyncpa [#allocation7], 0
    %s28 = scalar_lea.sflag [#allocation7], 1
    %29 = vsyncpa %s28, 0
    %30 = vsyncpa [#allocation10], 0
    %s31 = scalar_lea.sflag [#allocation10], 1
    %32 = vsyncpa %s31, 0
    loop: start=0, step=1, limit=4
    $region2: #{tpu_custom_call.1} parent=1 // loop_pre_header
      _
    $region3: #{tpu_custom_call.1} parent=1 // loop_header
      %s34 = sphi 0, %s38
      %p35 = scmp.ge.s32.totalorder %s34, 4
      %s41 = sphi 0, %s53
      %s42 = sphi 0, %s49
      %s43 = sphi 0, %s41
      %s44 = sphi 0, %s42
      %s45 = sphi 0, %s43
      %s46 = sphi 0, %s44
      %s54 = sphi 0, %s54
      %s56 = sphi 0, %s54
      %s57 = sphi 0, %s56
      %s71 = sphi 0, %s57
      %s79 = sphi 0, %s81
      %s82 = sphi 0, %s79
      %s83 = sphi 0, %s82
      %s99 = sphi 0, %s83
      %s107 = sphi 0, %s109
      %s110 = sphi 0, %s107
      %s111 = sphi 0, %s110
      %s127 = sphi 0, %s111
      %s133 = sphi 0, %s135
      %s136 = sphi 0, %s133
      %s137 = sphi 0, %s136
      %s153 = sphi 0, %s137
      %s161 = sphi 0, %s163
      %s164 = sphi 0, %s161
      %s165 = sphi 0, %s164
      %s181 = sphi 0, %s165
      %s189 = sphi 0, %s191
      %s192 = sphi 0, %s189
      %s193 = sphi 0, %s192
      %s209 = sphi 0, %s193
      %s217 = sphi 0, %s219
      %s220 = sphi 0, %s217
      %s221 = sphi 0, %s220
      %s237 = sphi 0, %s221
      %s245 = sphi 0, %s247
      %s248 = sphi 0, %s245
      %s249 = sphi 0, %s248
      %s265 = sphi 0, %s249
      %s269 = sphi 0, %s269
      %s271 = sphi 0, %s269
      %s272 = sphi 0, %s271
      %s286 = sphi 0, %s272
      %s290 = sphi 0, %s290
      %s292 = sphi 0, %s290
      %s293 = sphi 0, %s292
      %s307 = sphi 0, %s293
      %s311 = sphi 0, %s311
      %s313 = sphi 0, %s311
      %s314 = sphi 0, %s313
      %s328 = sphi 0, %s314
      %s332 = sphi 0, %s332
      %s334 = sphi 0, %s332
      %s335 = sphi 0, %s334
      %s349 = sphi 0, %s335
      %s357 = sphi 0, %s359
      %s360 = sphi 0, %s357
      %s361 = sphi 0, %s360
      %s377 = sphi 0, %s361
      %s385 = sphi 0, %s387
      %s388 = sphi 0, %s385
      %s389 = sphi 0, %s388
      %s405 = sphi 0, %s389
      %s413 = sphi 0, %s415
      %s416 = sphi 0, %s413
      %s417 = sphi 0, %s416
      %s433 = sphi 0, %s417
      %s441 = sphi 0, %s443
      %s444 = sphi 0, %s441
      %s445 = sphi 0, %s444
      %s461 = sphi 0, %s445
      %s469 = sphi 0, %s471
      %s472 = sphi 0, %s469
      %s473 = sphi 0, %s472
      %s489 = sphi 0, %s473
      %s497 = sphi 0, %s499
      %s500 = sphi 0, %s497
      %s501 = sphi 0, %s500
      %s517 = sphi 0, %s501
    $region4: #{tpu_custom_call.1} parent=1 // loop_header_branch
      %37 = sbr.rel (%p35) target = $region8
    $region5: #{tpu_custom_call.1} parent=1 // loop_body
      %s39 = ssub.s32 %s34, 1
      %s40 = ssub.s32 %s34, 2
      %s47 = sadd.s32 1, %s42
      %p48 = scmp.ge.s32.totalorder %s47, 1
      %s49 = scalar_select %p48, 0, %s47
      %s50 = sadd.s32 1, %s41
      %s51 = scalar_select %p48, %s50, %s41
      %p52 = scmp.ge.s32.totalorder %s51, 2
      %s53 = scalar_select %p52, 0, %s51
      %s55 = sadd.s32 %s54, 1
      %p58 = scmp.eq.s32.totalorder %s34, 1
      %p59 = scmp.ne.s32.totalorder %s54, %s56
      %p60 = scmp.eq.s32.totalorder %s34, 0
      %p61 = por %p59, %p60
      %p62 = scmp.ne.s32.totalorder %s54, %s56
      %p63 = scmp.eq.s32.totalorder %s39, 1
      %p64 = por %p62, %p63
      %p65 = scmp.ne.s32.totalorder %s56, %s57
      %p66 = scmp.eq.s32.totalorder %s39, 0
      %p67 = por %p65, %p66
      %p68 = scmp.ne.s32.totalorder %s56, %s57
      %p69 = scmp.eq.s32.totalorder %s40, 1
      %p70 = por %p68, %p69
      %p72 = scmp.ne.s32.totalorder %s57, %s71
      %p73 = scmp.eq.s32.totalorder %s40, 0
      %p74 = por %p72, %p73
      %s75 = ssub.s32 %s41, %s53
      %s76 = ssub.s32 %s42, %s49
      %s77 = sor.u32 %s75, %s76
      %p78 = scmp.eq.s32.totalorder %s77, 0
      %s80 = sadd.s32 %s79, 1
      %s81 = scalar_select %p78, %s79, %s80
      %p84 = pneg %p78
      %p85 = scmp.eq.s32.totalorder %s34, 1
      %p86 = por %p84, %p85
      %p87 = scmp.ne.s32.totalorder %s79, %s82
      %p88 = scmp.eq.s32.totalorder %s34, 0
      %p89 = por %p87, %p88
      %p90 = scmp.ne.s32.totalorder %s79, %s82
      %p91 = scmp.eq.s32.totalorder %s39, 1
      %p92 = por %p90, %p91
      %p93 = scmp.ne.s32.totalorder %s82, %s83
      %p94 = scmp.eq.s32.totalorder %s39, 0
      %p95 = por %p93, %p94
      %p96 = scmp.ne.s32.totalorder %s82, %s83
      %p97 = scmp.eq.s32.totalorder %s40, 1
      %p98 = por %p96, %p97
      %p100 = scmp.ne.s32.totalorder %s83, %s99
      %p101 = scmp.eq.s32.totalorder %s40, 0
      %p102 = por %p100, %p101
      %s103 = ssub.s32 %s41, %s53
      %s104 = ssub.s32 %s42, %s49
      %s105 = sor.u32 %s103, %s104
      %p106 = scmp.eq.s32.totalorder %s105, 0
      %s108 = sadd.s32 %s107, 1
      %s109 = scalar_select %p106, %s107, %s108
      %p112 = pneg %p106
      %p113 = scmp.eq.s32.totalorder %s34, 1
      %p114 = por %p112, %p113
      %p115 = scmp.ne.s32.totalorder %s107, %s110
      %p116 = scmp.eq.s32.totalorder %s34, 0
      %p117 = por %p115, %p116
      %p118 = scmp.ne.s32.totalorder %s107, %s110
      %p119 = scmp.eq.s32.totalorder %s39, 1
      %p120 = por %p118, %p119
      %p121 = scmp.ne.s32.totalorder %s110, %s111
      %p122 = scmp.eq.s32.totalorder %s39, 0
      %p123 = por %p121, %p122
      %p124 = scmp.ne.s32.totalorder %s110, %s111
      %p125 = scmp.eq.s32.totalorder %s40, 1
      %p126 = por %p124, %p125
      %p128 = scmp.ne.s32.totalorder %s111, %s127
      %p129 = scmp.eq.s32.totalorder %s40, 0
      %p130 = por %p128, %p129
      %s131 = ssub.s32 %s41, %s53
      %p132 = scmp.eq.s32.totalorder %s131, 0
      %s134 = sadd.s32 %s133, 1
      %s135 = scalar_select %p132, %s133, %s134
      %p138 = pneg %p132
      %p139 = scmp.eq.s32.totalorder %s34, 1
      %p140 = por %p138, %p139
      %p141 = scmp.ne.s32.totalorder %s133, %s136
      %p142 = scmp.eq.s32.totalorder %s34, 0
      %p143 = por %p141, %p142
      %p144 = scmp.ne.s32.totalorder %s133, %s136
      %p145 = scmp.eq.s32.totalorder %s39, 1
      %p146 = por %p144, %p145
      %p147 = scmp.ne.s32.totalorder %s136, %s137
      %p148 = scmp.eq.s32.totalorder %s39, 0
      %p149 = por %p147, %p148
      %p150 = scmp.ne.s32.totalorder %s136, %s137
      %p151 = scmp.eq.s32.totalorder %s40, 1
      %p152 = por %p150, %p151
      %p154 = scmp.ne.s32.totalorder %s137, %s153
      %p155 = scmp.eq.s32.totalorder %s40, 0
      %p156 = por %p154, %p155
      %s157 = ssub.s32 %s41, %s53
      %s158 = ssub.s32 %s42, %s49
      %s159 = sor.u32 %s157, %s158
      %p160 = scmp.eq.s32.totalorder %s159, 0
      %s162 = sadd.s32 %s161, 1
      %s163 = scalar_select %p160, %s161, %s162
      %p166 = pneg %p160
      %p167 = scmp.eq.s32.totalorder %s34, 1
      %p168 = por %p166, %p167
      %p169 = scmp.ne.s32.totalorder %s161, %s164
      %p170 = scmp.eq.s32.totalorder %s34, 0
      %p171 = por %p169, %p170
      %p172 = scmp.ne.s32.totalorder %s161, %s164
      %p173 = scmp.eq.s32.totalorder %s39, 1
      %p174 = por %p172, %p173
      %p175 = scmp.ne.s32.totalorder %s164, %s165
      %p176 = scmp.eq.s32.totalorder %s39, 0
      %p177 = por %p175, %p176
      %p178 = scmp.ne.s32.totalorder %s164, %s165
      %p179 = scmp.eq.s32.totalorder %s40, 1
      %p180 = por %p178, %p179
      %p182 = scmp.ne.s32.totalorder %s165, %s181
      %p183 = scmp.eq.s32.totalorder %s40, 0
      %p184 = por %p182, %p183
      %s185 = ssub.s32 %s41, %s53
      %s186 = ssub.s32 %s42, %s49
      %s187 = sor.u32 %s185, %s186
      %p188 = scmp.eq.s32.totalorder %s187, 0
      %s190 = sadd.s32 %s189, 1
      %s191 = scalar_select %p188, %s189, %s190
      %p194 = pneg %p188
      %p195 = scmp.eq.s32.totalorder %s34, 1
      %p196 = por %p194, %p195
      %p197 = scmp.ne.s32.totalorder %s189, %s192
      %p198 = scmp.eq.s32.totalorder %s34, 0
      %p199 = por %p197, %p198
      %p200 = scmp.ne.s32.totalorder %s189, %s192
      %p201 = scmp.eq.s32.totalorder %s39, 1
      %p202 = por %p200, %p201
      %p203 = scmp.ne.s32.totalorder %s192, %s193
      %p204 = scmp.eq.s32.totalorder %s39, 0
      %p205 = por %p203, %p204
      %p206 = scmp.ne.s32.totalorder %s192, %s193
      %p207 = scmp.eq.s32.totalorder %s40, 1
      %p208 = por %p206, %p207
      %p210 = scmp.ne.s32.totalorder %s193, %s209
      %p211 = scmp.eq.s32.totalorder %s40, 0
      %p212 = por %p210, %p211
      %s213 = ssub.s32 %s41, %s53
      %s214 = ssub.s32 %s42, %s49
      %s215 = sor.u32 %s213, %s214
      %p216 = scmp.eq.s32.totalorder %s215, 0
      %s218 = sadd.s32 %s217, 1
      %s219 = scalar_select %p216, %s217, %s218
      %p222 = pneg %p216
      %p223 = scmp.eq.s32.totalorder %s34, 1
      %p224 = por %p222, %p223
      %p225 = scmp.ne.s32.totalorder %s217, %s220
      %p226 = scmp.eq.s32.totalorder %s34, 0
      %p227 = por %p225, %p226
      %p228 = scmp.ne.s32.totalorder %s217, %s220
      %p229 = scmp.eq.s32.totalorder %s39, 1
      %p230 = por %p228, %p229
      %p231 = scmp.ne.s32.totalorder %s220, %s221
      %p232 = scmp.eq.s32.totalorder %s39, 0
      %p233 = por %p231, %p232
      %p234 = scmp.ne.s32.totalorder %s220, %s221
      %p235 = scmp.eq.s32.totalorder %s40, 1
      %p236 = por %p234, %p235
      %p238 = scmp.ne.s32.totalorder %s221, %s237
      %p239 = scmp.eq.s32.totalorder %s40, 0
      %p240 = por %p238, %p239
      %s241 = ssub.s32 %s41, %s53
      %s242 = ssub.s32 %s42, %s49
      %s243 = sor.u32 %s241, %s242
      %p244 = scmp.eq.s32.totalorder %s243, 0
      %s246 = sadd.s32 %s245, 1
      %s247 = scalar_select %p244, %s245, %s246
      %p250 = pneg %p244
      %p251 = scmp.eq.s32.totalorder %s34, 1
      %p252 = por %p250, %p251
      %p253 = scmp.ne.s32.totalorder %s245, %s248
      %p254 = scmp.eq.s32.totalorder %s34, 0
      %p255 = por %p253, %p254
      %p256 = scmp.ne.s32.totalorder %s245, %s248
      %p257 = scmp.eq.s32.totalorder %s39, 1
      %p258 = por %p256, %p257
      %p259 = scmp.ne.s32.totalorder %s248, %s249
      %p260 = scmp.eq.s32.totalorder %s39, 0
      %p261 = por %p259, %p260
      %p262 = scmp.ne.s32.totalorder %s248, %s249
      %p263 = scmp.eq.s32.totalorder %s40, 1
      %p264 = por %p262, %p263
      %p266 = scmp.ne.s32.totalorder %s249, %s265
      %p267 = scmp.eq.s32.totalorder %s40, 0
      %p268 = por %p266, %p267
      %s270 = sadd.s32 %s269, 1
      %p273 = scmp.eq.s32.totalorder %s34, 1
      %p274 = scmp.ne.s32.totalorder %s269, %s271
      %p275 = scmp.eq.s32.totalorder %s34, 0
      %p276 = por %p274, %p275
      %p277 = scmp.ne.s32.totalorder %s269, %s271
      %p278 = scmp.eq.s32.totalorder %s39, 1
      %p279 = por %p277, %p278
      %p280 = scmp.ne.s32.totalorder %s271, %s272
      %p281 = scmp.eq.s32.totalorder %s39, 0
      %p282 = por %p280, %p281
      %p283 = scmp.ne.s32.totalorder %s271, %s272
      %p284 = scmp.eq.s32.totalorder %s40, 1
      %p285 = por %p283, %p284
      %p287 = scmp.ne.s32.totalorder %s272, %s286
      %p288 = scmp.eq.s32.totalorder %s40, 0
      %p289 = por %p287, %p288
      %s291 = sadd.s32 %s290, 1
      %p294 = scmp.eq.s32.totalorder %s34, 1
      %p295 = scmp.ne.s32.totalorder %s290, %s292
      %p296 = scmp.eq.s32.totalorder %s34, 0
      %p297 = por %p295, %p296
      %p298 = scmp.ne.s32.totalorder %s290, %s292
      %p299 = scmp.eq.s32.totalorder %s39, 1
      %p300 = por %p298, %p299
      %p301 = scmp.ne.s32.totalorder %s292, %s293
      %p302 = scmp.eq.s32.totalorder %s39, 0
      %p303 = por %p301, %p302
      %p304 = scmp.ne.s32.totalorder %s292, %s293
      %p305 = scmp.eq.s32.totalorder %s40, 1
      %p306 = por %p304, %p305
      %p308 = scmp.ne.s32.totalorder %s293, %s307
      %p309 = scmp.eq.s32.totalorder %s40, 0
      %p310 = por %p308, %p309
      %s312 = sadd.s32 %s311, 1
      %p315 = scmp.eq.s32.totalorder %s34, 1
      %p316 = scmp.ne.s32.totalorder %s311, %s313
      %p317 = scmp.eq.s32.totalorder %s34, 0
      %p318 = por %p316, %p317
      %p319 = scmp.ne.s32.totalorder %s311, %s313
      %p320 = scmp.eq.s32.totalorder %s39, 1
      %p321 = por %p319, %p320
      %p322 = scmp.ne.s32.totalorder %s313, %s314
      %p323 = scmp.eq.s32.totalorder %s39, 0
      %p324 = por %p322, %p323
      %p325 = scmp.ne.s32.totalorder %s313, %s314
      %p326 = scmp.eq.s32.totalorder %s40, 1
      %p327 = por %p325, %p326
      %p329 = scmp.ne.s32.totalorder %s314, %s328
      %p330 = scmp.eq.s32.totalorder %s40, 0
      %p331 = por %p329, %p330
      %s333 = sadd.s32 %s332, 1
      %p336 = scmp.eq.s32.totalorder %s34, 1
      %p337 = scmp.ne.s32.totalorder %s332, %s334
      %p338 = scmp.eq.s32.totalorder %s34, 0
      %p339 = por %p337, %p338
      %p340 = scmp.ne.s32.totalorder %s332, %s334
      %p341 = scmp.eq.s32.totalorder %s39, 1
      %p342 = por %p340, %p341
      %p343 = scmp.ne.s32.totalorder %s334, %s335
      %p344 = scmp.eq.s32.totalorder %s39, 0
      %p345 = por %p343, %p344
      %p346 = scmp.ne.s32.totalorder %s334, %s335
      %p347 = scmp.eq.s32.totalorder %s40, 1
      %p348 = por %p346, %p347
      %p350 = scmp.ne.s32.totalorder %s335, %s349
      %p351 = scmp.eq.s32.totalorder %s40, 0
      %p352 = por %p350, %p351
      %s353 = ssub.s32 %s41, %s53
      %s354 = ssub.s32 %s42, %s49
      %s355 = sor.u32 %s353, %s354
      %p356 = scmp.eq.s32.totalorder %s355, 0
      %s358 = sadd.s32 %s357, 1
      %s359 = scalar_select %p356, %s357, %s358
      %p362 = pneg %p356
      %p363 = scmp.eq.s32.totalorder %s34, 1
      %p364 = por %p362, %p363
      %p365 = scmp.ne.s32.totalorder %s357, %s360
      %p366 = scmp.eq.s32.totalorder %s34, 0
      %p367 = por %p365, %p366
      %p368 = scmp.ne.s32.totalorder %s357, %s360
      %p369 = scmp.eq.s32.totalorder %s39, 1
      %p370 = por %p368, %p369
      %p371 = scmp.ne.s32.totalorder %s360, %s361
      %p372 = scmp.eq.s32.totalorder %s39, 0
      %p373 = por %p371, %p372
      %p374 = scmp.ne.s32.totalorder %s360, %s361
      %p375 = scmp.eq.s32.totalorder %s40, 1
      %p376 = por %p374, %p375
      %p378 = scmp.ne.s32.totalorder %s361, %s377
      %p379 = scmp.eq.s32.totalorder %s40, 0
      %p380 = por %p378, %p379
      %s381 = ssub.s32 %s41, %s53
      %s382 = ssub.s32 %s42, %s49
      %s383 = sor.u32 %s381, %s382
      %p384 = scmp.eq.s32.totalorder %s383, 0
      %s386 = sadd.s32 %s385, 1
      %s387 = scalar_select %p384, %s385, %s386
      %p390 = pneg %p384
      %p391 = scmp.eq.s32.totalorder %s34, 1
      %p392 = por %p390, %p391
      %p393 = scmp.ne.s32.totalorder %s385, %s388
      %p394 = scmp.eq.s32.totalorder %s34, 0
      %p395 = por %p393, %p394
      %p396 = scmp.ne.s32.totalorder %s385, %s388
      %p397 = scmp.eq.s32.totalorder %s39, 1
      %p398 = por %p396, %p397
      %p399 = scmp.ne.s32.totalorder %s388, %s389
      %p400 = scmp.eq.s32.totalorder %s39, 0
      %p401 = por %p399, %p400
      %p402 = scmp.ne.s32.totalorder %s388, %s389
      %p403 = scmp.eq.s32.totalorder %s40, 1
      %p404 = por %p402, %p403
      %p406 = scmp.ne.s32.totalorder %s389, %s405
      %p407 = scmp.eq.s32.totalorder %s40, 0
      %p408 = por %p406, %p407
      %s409 = ssub.s32 %s41, %s53
      %s410 = ssub.s32 %s42, %s49
      %s411 = sor.u32 %s409, %s410
      %p412 = scmp.eq.s32.totalorder %s411, 0
      %s414 = sadd.s32 %s413, 1
      %s415 = scalar_select %p412, %s413, %s414
      %p418 = pneg %p412
      %p419 = scmp.eq.s32.totalorder %s34, 1
      %p420 = por %p418, %p419
      %p421 = scmp.ne.s32.totalorder %s413, %s416
      %p422 = scmp.eq.s32.totalorder %s34, 0
      %p423 = por %p421, %p422
      %p424 = scmp.ne.s32.totalorder %s413, %s416
      %p425 = scmp.eq.s32.totalorder %s39, 1
      %p426 = por %p424, %p425
      %p427 = scmp.ne.s32.totalorder %s416, %s417
      %p428 = scmp.eq.s32.totalorder %s39, 0
      %p429 = por %p427, %p428
      %p430 = scmp.ne.s32.totalorder %s416, %s417
      %p431 = scmp.eq.s32.totalorder %s40, 1
      %p432 = por %p430, %p431
      %p434 = scmp.ne.s32.totalorder %s417, %s433
      %p435 = scmp.eq.s32.totalorder %s40, 0
      %p436 = por %p434, %p435
      %s437 = ssub.s32 %s41, %s53
      %s438 = ssub.s32 %s42, %s49
      %s439 = sor.u32 %s437, %s438
      %p440 = scmp.eq.s32.totalorder %s439, 0
      %s442 = sadd.s32 %s441, 1
      %s443 = scalar_select %p440, %s441, %s442
      %p446 = pneg %p440
      %p447 = scmp.eq.s32.totalorder %s34, 1
      %p448 = por %p446, %p447
      %p449 = scmp.ne.s32.totalorder %s441, %s444
      %p450 = scmp.eq.s32.totalorder %s34, 0
      %p451 = por %p449, %p450
      %p452 = scmp.ne.s32.totalorder %s441, %s444
      %p453 = scmp.eq.s32.totalorder %s39, 1
      %p454 = por %p452, %p453
      %p455 = scmp.ne.s32.totalorder %s444, %s445
      %p456 = scmp.eq.s32.totalorder %s39, 0
      %p457 = por %p455, %p456
      %p458 = scmp.ne.s32.totalorder %s444, %s445
      %p459 = scmp.eq.s32.totalorder %s40, 1
      %p460 = por %p458, %p459
      %p462 = scmp.ne.s32.totalorder %s445, %s461
      %p463 = scmp.eq.s32.totalorder %s40, 0
      %p464 = por %p462, %p463
      %s465 = ssub.s32 %s41, %s53
      %s466 = ssub.s32 %s42, %s49
      %s467 = sor.u32 %s465, %s466
      %p468 = scmp.eq.s32.totalorder %s467, 0
      %s470 = sadd.s32 %s469, 1
      %s471 = scalar_select %p468, %s469, %s470
      %p474 = pneg %p468
      %p475 = scmp.eq.s32.totalorder %s34, 1
      %p476 = por %p474, %p475
      %p477 = scmp.ne.s32.totalorder %s469, %s472
      %p478 = scmp.eq.s32.totalorder %s34, 0
      %p479 = por %p477, %p478
      %p480 = scmp.ne.s32.totalorder %s469, %s472
      %p481 = scmp.eq.s32.totalorder %s39, 1
      %p482 = por %p480, %p481
      %p483 = scmp.ne.s32.totalorder %s472, %s473
      %p484 = scmp.eq.s32.totalorder %s39, 0
      %p485 = por %p483, %p484
      %p486 = scmp.ne.s32.totalorder %s472, %s473
      %p487 = scmp.eq.s32.totalorder %s40, 1
      %p488 = por %p486, %p487
      %p490 = scmp.ne.s32.totalorder %s473, %s489
      %p491 = scmp.eq.s32.totalorder %s40, 0
      %p492 = por %p490, %p491
      %s493 = ssub.s32 %s41, %s53
      %s494 = ssub.s32 %s42, %s49
      %s495 = sor.u32 %s493, %s494
      %p496 = scmp.eq.s32.totalorder %s495, 0
      %s498 = sadd.s32 %s497, 1
      %s499 = scalar_select %p496, %s497, %s498
      %p502 = pneg %p496
      %p503 = scmp.eq.s32.totalorder %s34, 1
      %p504 = por %p502, %p503
      %p505 = scmp.ne.s32.totalorder %s497, %s500
      %p506 = scmp.eq.s32.totalorder %s34, 0
      %p507 = por %p505, %p506
      %p508 = scmp.ne.s32.totalorder %s497, %s500
      %p509 = scmp.eq.s32.totalorder %s39, 1
      %p510 = por %p508, %p509
      %p511 = scmp.ne.s32.totalorder %s500, %s501
      %p512 = scmp.eq.s32.totalorder %s39, 0
      %p513 = por %p511, %p512
      %p514 = scmp.ne.s32.totalorder %s500, %s501
      %p515 = scmp.eq.s32.totalorder %s40, 1
      %p516 = por %p514, %p515
      %p518 = scmp.ne.s32.totalorder %s501, %s517
      %p519 = scmp.eq.s32.totalorder %s40, 0
      %p520 = por %p518, %p519
      %p521 = scmp.le.s32.totalorder 1, %s34
      %p522 = scmp.lt.s32.totalorder %s34, 3
      %p523 = pnand %p521, %p522
      %p524 = pneg %p523
      // Predicated region
      $region9: #{tpu_custom_call.1} parent=5 // pred_check
        _
      $region10: #{tpu_custom_call.1} parent=5 // pred_check_branch
        %526 = sbr.rel (%p523) target = $region12
      $region11: #{tpu_custom_call.1} parent=5 // pred_region
        %s527 = ssub.s32 %s34, 1
        // Predicated region
        $region13: #{tpu_custom_call.1} parent=11 // pred_check
          %p528 = pneg %p67
        $region14: #{tpu_custom_call.1} parent=11 // pred_check_branch
          %530 = sbr.rel (%p528) target = $region16
        $region15: #{tpu_custom_call.1} parent=11 // pred_region
          %532 = vsyncadd [#allocation4], 0
          %s534 = sshll.u32 %s0, 4
          %s535 = int_to_ptr.vmem [resolvable:$true] %s534
          %537 = dma.vmem_to_smem %s535, 32, [#allocation2], [#allocation4]
        $region16: #{tpu_custom_call.1} parent=11 // pred_fallthru
          _
        // Predicated region
        $region17: #{tpu_custom_call.1} parent=11 // pred_check
          %p538 = pneg %p282
        $region18: #{tpu_custom_call.1} parent=11 // pred_check_branch
          %540 = sbr.rel (%p538) target = $region20
        $region19: #{tpu_custom_call.1} parent=11 // pred_region
          _
        $region20: #{tpu_custom_call.1} parent=11 // pred_fallthru
          _
        // Predicated region
        $region21: #{tpu_custom_call.1} parent=11 // pred_check
          %p541 = pneg %p303
        $region22: #{tpu_custom_call.1} parent=11 // pred_check_branch
          %543 = sbr.rel (%p541) target = $region24
        $region23: #{tpu_custom_call.1} parent=11 // pred_region
          _
        $region24: #{tpu_custom_call.1} parent=11 // pred_fallthru
          _
        // Predicated region
        $region25: #{tpu_custom_call.1} parent=11 // pred_check
          %p544 = pneg %p324
        $region26: #{tpu_custom_call.1} parent=11 // pred_check_branch
          %546 = sbr.rel (%p544) target = $region28
        $region27: #{tpu_custom_call.1} parent=11 // pred_region
          _
        $region28: #{tpu_custom_call.1} parent=11 // pred_fallthru
          _
        // Predicated region
        $region29: #{tpu_custom_call.1} parent=11 // pred_check
          %p547 = pneg %p345
        $region30: #{tpu_custom_call.1} parent=11 // pred_check_branch
          %549 = sbr.rel (%p547) target = $region32
        $region31: #{tpu_custom_call.1} parent=11 // pred_region
          _
        $region32: #{tpu_custom_call.1} parent=11 // pred_fallthru
          _
      $region12: #{tpu_custom_call.1} parent=5 // pred_fallthru
        _
      %p550 = scmp.lt.s32.totalorder %s34, 2
      // Predicated region
      $region33: #{tpu_custom_call.1} parent=5 // pred_check
        %p551 = pneg %p550
      $region34: #{tpu_custom_call.1} parent=5 // pred_check_branch
        %553 = sbr.rel (%p551) target = $region36
      $region35: #{tpu_custom_call.1} parent=5 // pred_region
        // Predicated region
        $region37: #{tpu_custom_call.1} parent=35 // pred_check
          %p554 = pneg %p89
        $region38: #{tpu_custom_call.1} parent=35 // pred_check_branch
          %556 = sbr.rel (%p554) target = $region40
        $region39: #{tpu_custom_call.1} parent=35 // pred_region
          %p557 = scmp.lt.s32.totalorder %s41, 1
          %s558 = scalar_select %p557, %s41, 1
          %p559 = scmp.lt.s32.totalorder %s42, 0
          %s560 = scalar_select %p559, %s42, 0
          %s561 = sadd.s32 %s560, %s558
          %s562 = smul.addr %s561, 4
          %s563 = scalar_lea.vmem %s1, %s562
        $region40: #{tpu_custom_call.1} parent=35 // pred_fallthru
          _
        // Predicated region
        $region41: #{tpu_custom_call.1} parent=35 // pred_check
          %p564 = pneg %p117
        $region42: #{tpu_custom_call.1} parent=35 // pred_check_branch
          %566 = sbr.rel (%p564) target = $region44
        $region43: #{tpu_custom_call.1} parent=35 // pred_region
          %p567 = scmp.lt.s32.totalorder %s41, 1
          %s568 = scalar_select %p567, %s41, 1
          %p569 = scmp.lt.s32.totalorder %s42, 0
          %s570 = scalar_select %p569, %s42, 0
          %s571 = sadd.s32 %s570, %s568
          %s572 = scalar_lea.vmem %s2, %s571
        $region44: #{tpu_custom_call.1} parent=35 // pred_fallthru
          _
        // Predicated region
        $region45: #{tpu_custom_call.1} parent=35 // pred_check
          %p573 = pneg %p143
        $region46: #{tpu_custom_call.1} parent=35 // pred_check_branch
          %575 = sbr.rel (%p573) target = $region48
        $region47: #{tpu_custom_call.1} parent=35 // pred_region
          %p576 = scmp.lt.s32.totalorder %s41, 1
          %s577 = scalar_select %p576, %s41, 1
          %s578 = smul.addr %s577, 24
          %s579 = smul.addr %s578, 8
          %s580 = scalar_lea.vmem %s3, %s579
        $region48: #{tpu_custom_call.1} parent=35 // pred_fallthru
          _
        // Predicated region
        $region49: #{tpu_custom_call.1} parent=35 // pred_check
          %p581 = pneg %p171
        $region50: #{tpu_custom_call.1} parent=35 // pred_check_branch
          %583 = sbr.rel (%p581) target = $region52
        $region51: #{tpu_custom_call.1} parent=35 // pred_region
          %p584 = scmp.lt.s32.totalorder %s41, 1
          %s585 = scalar_select %p584, %s41, 1
          %p586 = scmp.lt.s32.totalorder %s42, 0
          %s587 = scalar_select %p586, %s42, 0
          %s588 = smul.addr %s585, 4
          %s589 = sadd.s32 %s587, %s588
          %s590 = smul.addr %s589, 4
          %s591 = scalar_lea.vmem %s4, %s590
        $region52: #{tpu_custom_call.1} parent=35 // pred_fallthru
          _
        // Predicated region
        $region53: #{tpu_custom_call.1} parent=35 // pred_check
          %p592 = pneg %p199
        $region54: #{tpu_custom_call.1} parent=35 // pred_check_branch
          %594 = sbr.rel (%p592) target = $region56
        $region55: #{tpu_custom_call.1} parent=35 // pred_region
          %p595 = scmp.lt.s32.totalorder %s41, 1
          %s596 = scalar_select %p595, %s41, 1
          %p597 = scmp.lt.s32.totalorder %s42, 0
          %s598 = scalar_select %p597, %s42, 0
          %s599 = smul.addr %s596, 4
          %s600 = sadd.s32 %s598, %s599
          %s601 = smul.addr %s600, 4
          %s602 = scalar_lea.vmem %s5, %s601
        $region56: #{tpu_custom_call.1} parent=35 // pred_fallthru
          _
        // Predicated region
        $region57: #{tpu_custom_call.1} parent=35 // pred_check
          %p603 = pneg %p227
        $region58: #{tpu_custom_call.1} parent=35 // pred_check_branch
          %605 = sbr.rel (%p603) target = $region60
        $region59: #{tpu_custom_call.1} parent=35 // pred_region
          %p606 = scmp.lt.s32.totalorder %s41, 1
          %s607 = scalar_select %p606, %s41, 1
          %p608 = scmp.lt.s32.totalorder %s42, 0
          %s609 = scalar_select %p608, %s42, 0
          %s610 = smul.addr %s607, 8
          %s611 = sadd.s32 %s609, %s610
          %s612 = smul.addr %s611, 4
          %s613 = scalar_lea.vmem %s6, %s612
        $region60: #{tpu_custom_call.1} parent=35 // pred_fallthru
          _
        // Predicated region
        $region61: #{tpu_custom_call.1} parent=35 // pred_check
          %p614 = pneg %p255
        $region62: #{tpu_custom_call.1} parent=35 // pred_check_branch
          %616 = sbr.rel (%p614) target = $region64
        $region63: #{tpu_custom_call.1} parent=35 // pred_region
          %p617 = scmp.lt.s32.totalorder %s41, 1
          %s618 = scalar_select %p617, %s41, 1
          %p619 = scmp.lt.s32.totalorder %s42, 0
          %s620 = scalar_select %p619, %s42, 0
          %s621 = smul.addr %s618, 8
          %s622 = sadd.s32 %s620, %s621
          %s623 = smul.addr %s622, 4
          %s624 = scalar_lea.vmem %s7, %s623
        $region64: #{tpu_custom_call.1} parent=35 // pred_fallthru
          _
      $region36: #{tpu_custom_call.1} parent=5 // pred_fallthru
        _
      %p625 = scmp.le.s32.totalorder 1, %s34
      %p626 = scmp.lt.s32.totalorder %s34, 3
      %p627 = pnand %p625, %p626
      %p628 = pneg %p627
      // Predicated region
      $region65: #{tpu_custom_call.1} parent=5 // pred_check
        _
      $region66: #{tpu_custom_call.1} parent=5 // pred_check_branch
        %630 = sbr.rel (%p627) target = $region68
      $region67: #{tpu_custom_call.1} parent=5 // pred_region
        %s631 = ssub.s32 %s34, 1
        // Predicated region
        $region69: #{tpu_custom_call.1} parent=67 // pred_check
          %p632 = pneg %p67
        $region70: #{tpu_custom_call.1} parent=67 // pred_check_branch
          %634 = sbr.rel (%p632) target = $region72
        $region71: #{tpu_custom_call.1} parent=67 // pred_region
          %636 = dma.done [#allocation4], 32
        $region72: #{tpu_custom_call.1} parent=67 // pred_fallthru
          _
        %637 = sfence
        %p638 = pneg %p67
        %p639 = pneg %p64
        %p640 = scmp.lt.s32.totalorder %s43, 1
        %s641 = scalar_select %p640, %s43, 1
        %p642 = scmp.lt.s32.totalorder %s44, 0
        %s643 = scalar_select %p642, %s44, 0
        %s644 = sadd.s32 %s643, %s641
        %s645 = smul.addr %s644, 4
        %s646 = scalar_lea.vmem %s1, %s645
        %p647 = pneg %p95
        %p648 = pneg %p92
        %p649 = scmp.lt.s32.totalorder %s43, 1
        %s650 = scalar_select %p649, %s43, 1
        %p651 = scmp.lt.s32.totalorder %s44, 0
        %s652 = scalar_select %p651, %s44, 0
        %s653 = sadd.s32 %s652, %s650
        %s654 = scalar_lea.vmem %s2, %s653
        %p655 = pneg %p123
        %p656 = pneg %p120
        %p657 = scmp.lt.s32.totalorder %s43, 1
        %s658 = scalar_select %p657, %s43, 1
        %s659 = smul.addr %s658, 24
        %s660 = smul.addr %s659, 8
        %s661 = scalar_lea.vmem %s3, %s660
        %p662 = pneg %p149
        %p663 = pneg %p146
        %p664 = scmp.lt.s32.totalorder %s43, 1
        %s665 = scalar_select %p664, %s43, 1
        %p666 = scmp.lt.s32.totalorder %s44, 0
        %s667 = scalar_select %p666, %s44, 0
        %s668 = smul.addr %s665, 4
        %s669 = sadd.s32 %s667, %s668
        %s670 = smul.addr %s669, 4
        %s671 = scalar_lea.vmem %s4, %s670
        %p672 = pneg %p177
        %p673 = pneg %p174
        %p674 = scmp.lt.s32.totalorder %s43, 1
        %s675 = scalar_select %p674, %s43, 1
        %p676 = scmp.lt.s32.totalorder %s44, 0
        %s677 = scalar_select %p676, %s44, 0
        %s678 = smul.addr %s675, 4
        %s679 = sadd.s32 %s677, %s678
        %s680 = smul.addr %s679, 4
        %s681 = scalar_lea.vmem %s5, %s680
        %p682 = pneg %p205
        %p683 = pneg %p202
        %p684 = scmp.lt.s32.totalorder %s43, 1
        %s685 = scalar_select %p684, %s43, 1
        %p686 = scmp.lt.s32.totalorder %s44, 0
        %s687 = scalar_select %p686, %s44, 0
        %s688 = smul.addr %s685, 8
        %s689 = sadd.s32 %s687, %s688
        %s690 = smul.addr %s689, 4
        %s691 = scalar_lea.vmem %s6, %s690
        %p692 = pneg %p233
        %p693 = pneg %p230
        %p694 = scmp.lt.s32.totalorder %s43, 1
        %s695 = scalar_select %p694, %s43, 1
        %p696 = scmp.lt.s32.totalorder %s44, 0
        %s697 = scalar_select %p696, %s44, 0
        %s698 = smul.addr %s695, 8
        %s699 = sadd.s32 %s697, %s698
        %s700 = smul.addr %s699, 4
        %s701 = scalar_lea.vmem %s7, %s700
        %p702 = pneg %p261
        %p703 = pneg %p258
        %p704 = pneg %p282
        %p705 = pneg %p279
        %p706 = pneg %p303
        %p707 = pneg %p300
        %p708 = pneg %p324
        %p709 = pneg %p321
        %p710 = pneg %p345
        %p711 = pneg %p342
        %p712 = pneg %p373
        %p713 = pneg %p370
        %p714 = scmp.lt.s32.totalorder %s43, 1
        %s715 = scalar_select %p714, %s43, 1
        %p716 = scmp.lt.s32.totalorder %s44, 0
        %s717 = scalar_select %p716, %s44, 0
        %s718 = sadd.s32 %s717, %s715
        %s719 = smul.addr %s718, 4
        %s720 = scalar_lea.vmem %s12, %s719
        %p721 = pneg %p401
        %p722 = pneg %p398
        %s723 = sand.u32 %s388, 1
        %s724 = scalar_lea.sflag [#allocation3], %s723
        %s725 = sand.u32 %s388, 1
        %s726 = smul.addr %s725, 16
        %s727 = scalar_lea.vmem [#allocation5], %s726
        %p728 = pneg %p429
        %p729 = pneg %p426
        %s730 = sand.u32 %s39, 1
        %s731 = scalar_lea.sflag [#allocation7], %s730
        %s732 = sand.u32 %s416, 1
        %s733 = smul.addr %s732, 16
        %s734 = scalar_lea.vmem [#allocation6], %s733
        %p735 = pneg %p457
        %p736 = pneg %p454
        %s737 = sand.u32 %s39, 1
        %s738 = scalar_lea.sflag [#allocation7], %s737
        %s739 = sand.u32 %s444, 1
        %s740 = smul.addr %s739, 32
        %s741 = scalar_lea.vmem [#allocation8], %s740
        %p742 = pneg %p485
        %p743 = pneg %p482
        %s744 = sand.u32 %s39, 1
        %s745 = scalar_lea.sflag [#allocation10], %s744
        %s746 = sand.u32 %s472, 1
        %s747 = smul.addr %s746, 32
        %s748 = scalar_lea.vmem [#allocation9], %s747
        %p749 = pneg %p513
        %p750 = pneg %p510
        %s751 = sand.u32 %s39, 1
        %s752 = scalar_lea.sflag [#allocation10], %s751
        %s753 = sand.u32 %s500, 1
        %s754 = smul.addr %s753, 2
        %s755 = scalar_lea.vmem [#allocation11], %s754
        %p756 = scmp.lt.s32.totalorder %s43, 1
        %s757 = scalar_select %p756, %s43, 1
        %p758 = scmp.lt.s32.totalorder %s44, 0
        %s759 = scalar_select %p758, %s44, 0
        %s760 = sadd.s32 %s759, %s757
        %s761 = smul.addr %s760, 4
        %s762 = scalar_lea.vmem %s1, %s761
        %p763 = scmp.lt.s32.totalorder %s43, 1
        %s764 = scalar_select %p763, %s43, 1
        %p765 = scmp.lt.s32.totalorder %s44, 0
        %s766 = scalar_select %p765, %s44, 0
        %s767 = sadd.s32 %s766, %s764
        %s768 = scalar_lea.vmem %s2, %s767
        %p769 = scmp.lt.s32.totalorder %s43, 1
        %s770 = scalar_select %p769, %s43, 1
        %s771 = smul.addr %s770, 24
        %s772 = smul.addr %s771, 8
        %s773 = scalar_lea.vmem %s3, %s772
        %p774 = scmp.lt.s32.totalorder %s43, 1
        %s775 = scalar_select %p774, %s43, 1
        %p776 = scmp.lt.s32.totalorder %s44, 0
        %s777 = scalar_select %p776, %s44, 0
        %s778 = smul.addr %s775, 4
        %s779 = sadd.s32 %s777, %s778
        %s780 = smul.addr %s779, 4
        %s781 = scalar_lea.vmem %s4, %s780
        %p782 = scmp.lt.s32.totalorder %s43, 1
        %s783 = scalar_select %p782, %s43, 1
        %p784 = scmp.lt.s32.totalorder %s44, 0
        %s785 = scalar_select %p784, %s44, 0
        %s786 = smul.addr %s783, 4
        %s787 = sadd.s32 %s785, %s786
        %s788 = smul.addr %s787, 4
        %s789 = scalar_lea.vmem %s5, %s788
        %p790 = scmp.lt.s32.totalorder %s43, 1
        %s791 = scalar_select %p790, %s43, 1
        %p792 = scmp.lt.s32.totalorder %s44, 0
        %s793 = scalar_select %p792, %s44, 0
        %s794 = smul.addr %s791, 8
        %s795 = sadd.s32 %s793, %s794
        %s796 = smul.addr %s795, 4
        %s797 = scalar_lea.vmem %s6, %s796
        %p798 = scmp.lt.s32.totalorder %s43, 1
        %s799 = scalar_select %p798, %s43, 1
        %p800 = scmp.lt.s32.totalorder %s44, 0
        %s801 = scalar_select %p800, %s44, 0
        %s802 = smul.addr %s799, 8
        %s803 = sadd.s32 %s801, %s802
        %s804 = smul.addr %s803, 4
        %s805 = scalar_lea.vmem %s7, %s804
        %p806 = scmp.lt.s32.totalorder %s43, 1
        %s807 = scalar_select %p806, %s43, 1
        %p808 = scmp.lt.s32.totalorder %s44, 0
        %s809 = scalar_select %p808, %s44, 0
        %s810 = sadd.s32 %s809, %s807
        %s811 = smul.addr %s810, 4
        %s812 = scalar_lea.vmem %s12, %s811
        %v814 = vld [vmem:[%s8] sm:$0xf]
        %v815 = vld [vmem:[%s8 + $0x4] sm:$0xf]
        %v816 = vld [vmem:[%s8 + $0x8] sm:$0xf]
        %v817 = vld [vmem:[%s8 + $0xc] sm:$0xf]
        %v818 = vld [vmem:[%s9] sm:$0xf]
        %v819 = vld [vmem:[%s9 + $0x4] sm:$0xf]
        %v820 = vld [vmem:[%s9 + $0x8] sm:$0xf]
        %v821 = vld [vmem:[%s9 + $0xc] sm:$0xf]
        %v822 = vld [vmem:[%s10] sm:$0xf]
        %v823 = vld [vmem:[%s10 + $0x4] sm:$0xf]
        %v824 = vld [vmem:[%s10 + $0x8] sm:$0xf]
        %v825 = vld [vmem:[%s10 + $0xc] sm:$0xf]
        %v826 = vld [vmem:[%s10 + $0x10] sm:$0xf]
        %v827 = vld [vmem:[%s10 + $0x14] sm:$0xf]
        %v828 = vld [vmem:[%s10 + $0x18] sm:$0xf]
        %v829 = vld [vmem:[%s10 + $0x1c] sm:$0xf]
        %v830 = vld [vmem:[%s11] sm:$0xf]
        %v831 = vld [vmem:[%s11 + $0x4] sm:$0xf]
        %v832 = vld [vmem:[%s11 + $0x8] sm:$0xf]
        %v833 = vld [vmem:[%s11 + $0xc] sm:$0xf]
        %v834 = vld [vmem:[%s11 + $0x10] sm:$0xf]
        %v835 = vld [vmem:[%s11 + $0x14] sm:$0xf]
        %v836 = vld [vmem:[%s11 + $0x18] sm:$0xf]
        %v837 = vld [vmem:[%s11 + $0x1c] sm:$0xf]
        %v838 = vlaneseq
        %v839 = vshrl.u32 %v838, 7
        %v840 = vld [vmem:[%s762] sm:$0x7]
        %s841 = smul.u32 %s43, 128
        %s842 = sld [smem:[#allocation2 + %s841]]
        %v843 = vstv %s842
        %v844 = vmul.f32 %v843, %v840
        %s845 = sadd.s32 %s841, 1
        %s846 = sld [smem:[#allocation2 + %s845]]
        %v847 = vstv %s846
        %v848 = vmul.f32 %v847, %v840
        %v850 = vrot.slane %v848, 1
        %v852 = vadd.f32 %v844, %v850
        %s853 = sadd.s32 %s841, 2
        %s854 = sld [smem:[#allocation2 + %s853]]
        %v855 = vstv %s854
        %v856 = vmul.f32 %v855, %v840
        %v858 = vrot.slane %v856, 2
        %v860 = vadd.f32 %v852, %v858
        %s861 = sadd.s32 %s841, 9
        %s862 = sld [smem:[#allocation2 + %s861]]
        %v863 = vstv %s862
        %v864 = vadd.f32 %v860, %v863
        %s865 = sadd.s32 %s841, 3
        %s866 = sld [smem:[#allocation2 + %s865]]
        %v867 = vstv %s866
        %v868 = vmul.f32 %v867, %v840
        %s869 = sadd.s32 %s841, 4
        %s870 = sld [smem:[#allocation2 + %s869]]
        %v871 = vstv %s870
        %v872 = vmul.f32 %v871, %v840
        %v874 = vrot.slane %v872, 1
        %v876 = vadd.f32 %v868, %v874
        %s877 = sadd.s32 %s841, 5
        %s878 = sld [smem:[#allocation2 + %s877]]
        %v879 = vstv %s878
        %v880 = vmul.f32 %v879, %v840
        %v882 = vrot.slane %v880, 2
        %v884 = vadd.f32 %v876, %v882
        %s885 = sadd.s32 %s841, 10
        %s886 = sld [smem:[#allocation2 + %s885]]
        %v887 = vstv %s886
        %v888 = vadd.f32 %v884, %v887
        %s889 = sadd.s32 %s841, 6
        %s890 = sld [smem:[#allocation2 + %s889]]
        %v891 = vstv %s890
        %v892 = vmul.f32 %v891, %v840
        %s893 = sadd.s32 %s841, 7
        %s894 = sld [smem:[#allocation2 + %s893]]
        %v895 = vstv %s894
        %v896 = vmul.f32 %v895, %v840
        %v898 = vrot.slane %v896, 1
        %v900 = vadd.f32 %v892, %v898
        %s901 = sadd.s32 %s841, 8
        %s902 = sld [smem:[#allocation2 + %s901]]
        %v903 = vstv %s902
        %v904 = vmul.f32 %v903, %v840
        %v906 = vrot.slane %v904, 2
        %v908 = vadd.f32 %v900, %v906
        %s909 = sadd.s32 %s841, 11
        %s910 = sld [smem:[#allocation2 + %s909]]
        %v911 = vstv %s910
        %v912 = vadd.f32 %v908, %v911
        %v913 = vand.u32 2147483647, %v864
        %v914 = vand.u32 2147483647, %v888
        %v915 = vand.u32 2147483647, %v912
        %vm916 = vcmp.le.f32.partialorder %v913, 0.2
        %vm917 = vcmp.le.f32.partialorder %v914, 0.2
        %vm918 = vmand %vm916, %vm917
        %vm919 = vcmp.le.f32.partialorder %v915, 0.2
        %vm920 = vmand %vm918, %vm919
        %v921 = vld [vmem:[%s781] sm:$0xf]
        %v922 = vld [vmem:[%s781 + $0x4] sm:$0xf]
        %v923 = vld [vmem:[%s781 + $0x8] sm:$0xf]
        %v924 = vld [vmem:[%s781 + $0xc] sm:$0xf]
        %v925 = vld [vmem:[%s773] sm:$0xff]
        %v926 = vld [vmem:[%s773 + $0x8] sm:$0xff]
        %v927 = vld [vmem:[%s773 + $0x10] sm:$0xff]
        %v928 = vld [vmem:[%s773 + $0x18] sm:$0xff]
        %930 = vset.pattern.permute.xlu0 0
        %931 = vperm.xlu0 %930, %v925
        %v932 = vpop.permute.xlu0 %931
        %935 = vset.pattern.permute.xlu0 0
        %936 = vperm.xlu0 %935, %v926
        %v937 = vpop.permute.xlu0 %936
        %940 = vset.pattern.permute.xlu0 0
        %941 = vperm.xlu0 %940, %v927
        %v942 = vpop.permute.xlu0 %941
        %945 = vset.pattern.permute.xlu0 0
        %946 = vperm.xlu0 %945, %v928
        %v947 = vpop.permute.xlu0 %946
        %v953 = vunpack.c.l.b16 %v814
        %v954 = vunpack.c.l.b16 %v815
        %v955 = vunpack.c.l.b16 %v816
        %v956 = vunpack.c.l.b16 %v817
        %v957 = vpack.c.b16 %v954, %v953
        %v958 = vpack.c.b16 %v956, %v955
        %v963 = vunpack.c.l.b16 %v921
        %v964 = vunpack.c.l.b16 %v922
        %v965 = vunpack.c.l.b16 %v923
        %v966 = vunpack.c.l.b16 %v924
        %v967 = vpack.c.b16 %v964, %v963
        %v968 = vpack.c.b16 %v966, %v965
        %vm971 = vcmask 261120
        %v973 = vsel %vm971, %v957, 0
        %v976 = vsel %vm971, %v958, 0
        %978 = vmatpush.bf16.msra.mxu0 0
        %979 = vmatpush.bf16.msra.mxu0 0
        %980 = vmatpush.bf16.msra.mxu0 0
        %981 = vmatpush.bf16.msra.mxu0 0
        %982 = vmatpush.bf16.msra.mxu0 0
        %983 = vmatpush.bf16.msra.mxu0 0
        %984 = vmatpush.bf16.msra.mxu0 %v968
        %985 = vmatpush.bf16.msra.mxu0 %v967
        %986 = vmatmul.bf16.gmra.mxu0 %v973
        %v987 = vpop.f32.mrf.mxu0
        %v988 = vadd.f32 %v932, %v987
        %v989 = vpop.f32.mrf.mxu0
        %v990 = vadd.f32 %v937, %v989
        %991 = vmatmul.bf16.gmra.mxu0 %v976
        %v992 = vpop.f32.mrf.mxu0
        %v993 = vadd.f32 %v942, %v992
        %v994 = vpop.f32.mrf.mxu0
        %v995 = vadd.f32 %v947, %v994
        %996 = vdwg.mxu0
        %v997 = vsel %vm920, 1, 0
        %v998 = vperm.slane %v997, 0
        %vm999 = vcmp.eq.s32.totalorder %v998, 1
        %v1000 = vsel %vm999, %v988, 0.0
        %v1001 = vsel %vm999, %v990, 0.0
        %v1002 = vsel %vm999, %v993, 0.0
        %v1003 = vsel %vm999, %v995, 0.0
        %v1004 = vpack.c.bf16 %v1000, %v1000
        %v1005 = vpack.c.bf16 %v1001, %v1001
        %v1006 = vpack.c.bf16 %v1002, %v1002
        %v1007 = vpack.c.bf16 %v1003, %v1003
        %1008 = vst [vmem:[%s727] sm:$0xf] %v1004
        %1009 = vst [vmem:[%s727 + $0x4] sm:$0xf] %v1005
        %1010 = vst [vmem:[%s727 + $0x8] sm:$0xf] %v1006
        %1011 = vst [vmem:[%s727 + $0xc] sm:$0xf] %v1007
        %v1012 = vld [vmem:[%s789] sm:$0xf]
        %v1013 = vld [vmem:[%s789 + $0x4] sm:$0xf]
        %v1014 = vld [vmem:[%s789 + $0x8] sm:$0xf]
        %v1015 = vld [vmem:[%s789 + $0xc] sm:$0xf]
        %v1016 = vld [vmem:[%s773 + $0x20] sm:$0xff]
        %v1017 = vld [vmem:[%s773 + $0x28] sm:$0xff]
        %v1018 = vld [vmem:[%s773 + $0x30] sm:$0xff]
        %v1019 = vld [vmem:[%s773 + $0x38] sm:$0xff]
        %1021 = vset.pattern.permute.xlu0 0
        %1022 = vperm.xlu0 %1021, %v1016
        %v1023 = vpop.permute.xlu0 %1022
        %1026 = vset.pattern.permute.xlu0 0
        %1027 = vperm.xlu0 %1026, %v1017
        %v1028 = vpop.permute.xlu0 %1027
        %1031 = vset.pattern.permute.xlu0 0
        %1032 = vperm.xlu0 %1031, %v1018
        %v1033 = vpop.permute.xlu0 %1032
        %1036 = vset.pattern.permute.xlu0 0
        %1037 = vperm.xlu0 %1036, %v1019
        %v1038 = vpop.permute.xlu0 %1037
        %v1044 = vunpack.c.l.b16 %v818
        %v1045 = vunpack.c.l.b16 %v819
        %v1046 = vunpack.c.l.b16 %v820
        %v1047 = vunpack.c.l.b16 %v821
        %v1048 = vpack.c.b16 %v1045, %v1044
        %v1049 = vpack.c.b16 %v1047, %v1046
        %v1054 = vunpack.c.l.b16 %v1012
        %v1055 = vunpack.c.l.b16 %v1013
        %v1056 = vunpack.c.l.b16 %v1014
        %v1057 = vunpack.c.l.b16 %v1015
        %v1058 = vpack.c.b16 %v1055, %v1054
        %v1059 = vpack.c.b16 %v1057, %v1056
        %v1063 = vsel %vm971, %v1048, 0
        %v1066 = vsel %vm971, %v1049, 0
        %1068 = vmatpush.bf16.msra.mxu0 0
        %1069 = vmatpush.bf16.msra.mxu0 0
        %1070 = vmatpush.bf16.msra.mxu0 0
        %1071 = vmatpush.bf16.msra.mxu0 0
        %1072 = vmatpush.bf16.msra.mxu0 0
        %1073 = vmatpush.bf16.msra.mxu0 0
        %1074 = vmatpush.bf16.msra.mxu0 %v1059
        %1075 = vmatpush.bf16.msra.mxu0 %v1058
        %1076 = vmatmul.bf16.gmra.mxu0 %v1063
        %v1077 = vpop.f32.mrf.mxu0
        %v1078 = vadd.f32 %v1023, %v1077
        %v1079 = vpop.f32.mrf.mxu0
        %v1080 = vadd.f32 %v1028, %v1079
        %1081 = vmatmul.bf16.gmra.mxu0 %v1066
        %v1082 = vpop.f32.mrf.mxu0
        %v1083 = vadd.f32 %v1033, %v1082
        %v1084 = vpop.f32.mrf.mxu0
        %v1085 = vadd.f32 %v1038, %v1084
        %1086 = vdwg.mxu0
        %v1087 = vsel %vm999, %v1078, 0.0
        %v1088 = vsel %vm999, %v1080, 0.0
        %v1089 = vsel %vm999, %v1083, 0.0
        %v1090 = vsel %vm999, %v1085, 0.0
        %v1091 = vpack.c.bf16 %v1087, %v1087
        %v1092 = vpack.c.bf16 %v1088, %v1088
        %v1093 = vpack.c.bf16 %v1089, %v1089
        %v1094 = vpack.c.bf16 %v1090, %v1090
        %1095 = vst [vmem:[%s734] sm:$0xf] %v1091
        %1096 = vst [vmem:[%s734 + $0x4] sm:$0xf] %v1092
        %1097 = vst [vmem:[%s734 + $0x8] sm:$0xf] %v1093
        %1098 = vst [vmem:[%s734 + $0xc] sm:$0xf] %v1094
        %v1099 = vld [vmem:[%s797] sm:$0xf]
        %v1100 = vld [vmem:[%s797 + $0x4] sm:$0xf]
        %v1101 = vld [vmem:[%s797 + $0x8] sm:$0xf]
        %v1102 = vld [vmem:[%s797 + $0xc] sm:$0xf]
        %v1103 = vld [vmem:[%s797 + $0x10] sm:$0xf]
        %v1104 = vld [vmem:[%s797 + $0x14] sm:$0xf]
        %v1105 = vld [vmem:[%s797 + $0x18] sm:$0xf]
        %v1106 = vld [vmem:[%s797 + $0x1c] sm:$0xf]
        %v1107 = vld [vmem:[%s773 + $0x40] sm:$0xff]
        %v1108 = vld [vmem:[%s773 + $0x48] sm:$0xff]
        %v1109 = vld [vmem:[%s773 + $0x50] sm:$0xff]
        %v1110 = vld [vmem:[%s773 + $0x58] sm:$0xff]
        %v1111 = vld [vmem:[%s773 + $0x60] sm:$0xff]
        %v1112 = vld [vmem:[%s773 + $0x68] sm:$0xff]
        %v1113 = vld [vmem:[%s773 + $0x70] sm:$0xff]
        %v1114 = vld [vmem:[%s773 + $0x78] sm:$0xff]
        %1116 = vset.pattern.permute.xlu0 0
        %1117 = vperm.xlu0 %1116, %v1107
        %v1118 = vpop.permute.xlu0 %1117
        %1121 = vset.pattern.permute.xlu0 0
        %1122 = vperm.xlu0 %1121, %v1108
        %v1123 = vpop.permute.xlu0 %1122
        %1126 = vset.pattern.permute.xlu0 0
        %1127 = vperm.xlu0 %1126, %v1109
        %v1128 = vpop.permute.xlu0 %1127
        %1131 = vset.pattern.permute.xlu0 0
        %1132 = vperm.xlu0 %1131, %v1110
        %v1133 = vpop.permute.xlu0 %1132
        %1136 = vset.pattern.permute.xlu0 0
        %1137 = vperm.xlu0 %1136, %v1111
        %v1138 = vpop.permute.xlu0 %1137
        %1141 = vset.pattern.permute.xlu0 0
        %1142 = vperm.xlu0 %1141, %v1112
        %v1143 = vpop.permute.xlu0 %1142
        %1146 = vset.pattern.permute.xlu0 0
        %1147 = vperm.xlu0 %1146, %v1113
        %v1148 = vpop.permute.xlu0 %1147
        %1151 = vset.pattern.permute.xlu0 0
        %1152 = vperm.xlu0 %1151, %v1114
        %v1153 = vpop.permute.xlu0 %1152
        %v1163 = vunpack.c.l.b16 %v822
        %v1164 = vunpack.c.l.b16 %v823
        %v1165 = vunpack.c.l.b16 %v824
        %v1166 = vunpack.c.l.b16 %v825
        %v1167 = vunpack.c.l.b16 %v826
        %v1168 = vunpack.c.l.b16 %v827
        %v1169 = vunpack.c.l.b16 %v828
        %v1170 = vunpack.c.l.b16 %v829
        %v1171 = vpack.c.b16 %v1164, %v1163
        %v1172 = vpack.c.b16 %v1166, %v1165
        %v1173 = vpack.c.b16 %v1168, %v1167
        %v1174 = vpack.c.b16 %v1170, %v1169
        %v1183 = vunpack.c.l.b16 %v1099
        %v1184 = vunpack.c.l.b16 %v1100
        %v1185 = vunpack.c.l.b16 %v1101
        %v1186 = vunpack.c.l.b16 %v1102
        %v1187 = vunpack.c.l.b16 %v1103
        %v1188 = vunpack.c.l.b16 %v1104
        %v1189 = vunpack.c.l.b16 %v1105
        %v1190 = vunpack.c.l.b16 %v1106
        %v1191 = vpack.c.b16 %v1184, %v1183
        %v1192 = vpack.c.b16 %v1186, %v1185
        %v1193 = vpack.c.b16 %v1188, %v1187
        %v1194 = vpack.c.b16 %v1190, %v1189
        %vm1199 = vcmask 523264
        %v1201 = vsel %vm1199, %v1171, 0
        %v1204 = vsel %vm1199, %v1172, 0
        %v1207 = vsel %vm1199, %v1173, 0
        %v1210 = vsel %vm1199, %v1174, 0
        %1212 = vmatpush.bf16.msra.mxu0 0
        %1213 = vmatpush.bf16.msra.mxu0 0
        %1214 = vmatpush.bf16.msra.mxu0 0
        %1215 = vmatpush.bf16.msra.mxu0 0
        %1216 = vmatpush.bf16.msra.mxu0 %v1194
        %1217 = vmatpush.bf16.msra.mxu0 %v1193
        %1218 = vmatpush.bf16.msra.mxu0 %v1192
        %1219 = vmatpush.bf16.msra.mxu0 %v1191
        %1220 = vmatmul.bf16.gmra.mxu0 %v1201
        %v1221 = vpop.f32.mrf.mxu0
        %v1222 = vadd.f32 %v1118, %v1221
        %v1223 = vpop.f32.mrf.mxu0
        %v1224 = vadd.f32 %v1123, %v1223
        %1225 = vmatmul.bf16.gmra.mxu0 %v1204
        %v1226 = vpop.f32.mrf.mxu0
        %v1227 = vadd.f32 %v1128, %v1226
        %v1228 = vpop.f32.mrf.mxu0
        %v1229 = vadd.f32 %v1133, %v1228
        %1230 = vmatmul.bf16.gmra.mxu0 %v1207
        %v1231 = vpop.f32.mrf.mxu0
        %v1232 = vadd.f32 %v1138, %v1231
        %v1233 = vpop.f32.mrf.mxu0
        %v1234 = vadd.f32 %v1143, %v1233
        %1235 = vmatmul.bf16.gmra.mxu0 %v1210
        %v1236 = vpop.f32.mrf.mxu0
        %v1237 = vadd.f32 %v1148, %v1236
        %v1238 = vpop.f32.mrf.mxu0
        %v1239 = vadd.f32 %v1153, %v1238
        %1240 = vdwg.mxu0
        %v1241 = vsel %vm999, %v1222, 0.0
        %v1242 = vsel %vm999, %v1224, 0.0
        %v1243 = vsel %vm999, %v1227, 0.0
        %v1244 = vsel %vm999, %v1229, 0.0
        %v1245 = vsel %vm999, %v1232, 0.0
        %v1246 = vsel %vm999, %v1234, 0.0
        %v1247 = vsel %vm999, %v1237, 0.0
        %v1248 = vsel %vm999, %v1239, 0.0
        %v1249 = vpack.c.bf16 %v1241, %v1241
        %v1250 = vpack.c.bf16 %v1242, %v1242
        %v1251 = vpack.c.bf16 %v1243, %v1243
        %v1252 = vpack.c.bf16 %v1244, %v1244
        %v1253 = vpack.c.bf16 %v1245, %v1245
        %v1254 = vpack.c.bf16 %v1246, %v1246
        %v1255 = vpack.c.bf16 %v1247, %v1247
        %v1256 = vpack.c.bf16 %v1248, %v1248
        %1257 = vst [vmem:[%s741] sm:$0xf] %v1249
        %1258 = vst [vmem:[%s741 + $0x4] sm:$0xf] %v1250
        %1259 = vst [vmem:[%s741 + $0x8] sm:$0xf] %v1251
        %1260 = vst [vmem:[%s741 + $0xc] sm:$0xf] %v1252
        %1261 = vst [vmem:[%s741 + $0x10] sm:$0xf] %v1253
        %1262 = vst [vmem:[%s741 + $0x14] sm:$0xf] %v1254
        %1263 = vst [vmem:[%s741 + $0x18] sm:$0xf] %v1255
        %1264 = vst [vmem:[%s741 + $0x1c] sm:$0xf] %v1256
        %v1265 = vld [vmem:[%s805] sm:$0xf]
        %v1266 = vld [vmem:[%s805 + $0x4] sm:$0xf]
        %v1267 = vld [vmem:[%s805 + $0x8] sm:$0xf]
        %v1268 = vld [vmem:[%s805 + $0xc] sm:$0xf]
        %v1269 = vld [vmem:[%s805 + $0x10] sm:$0xf]
        %v1270 = vld [vmem:[%s805 + $0x14] sm:$0xf]
        %v1271 = vld [vmem:[%s805 + $0x18] sm:$0xf]
        %v1272 = vld [vmem:[%s805 + $0x1c] sm:$0xf]
        %v1273 = vld [vmem:[%s773 + $0x80] sm:$0xff]
        %v1274 = vld [vmem:[%s773 + $0x88] sm:$0xff]
        %v1275 = vld [vmem:[%s773 + $0x90] sm:$0xff]
        %v1276 = vld [vmem:[%s773 + $0x98] sm:$0xff]
        %v1277 = vld [vmem:[%s773 + $0xa0] sm:$0xff]
        %v1278 = vld [vmem:[%s773 + $0xa8] sm:$0xff]
        %v1279 = vld [vmem:[%s773 + $0xb0] sm:$0xff]
        %v1280 = vld [vmem:[%s773 + $0xb8] sm:$0xff]
        %1282 = vset.pattern.permute.xlu0 0
        %1283 = vperm.xlu0 %1282, %v1273
        %v1284 = vpop.permute.xlu0 %1283
        %1287 = vset.pattern.permute.xlu0 0
        %1288 = vperm.xlu0 %1287, %v1274
        %v1289 = vpop.permute.xlu0 %1288
        %1292 = vset.pattern.permute.xlu0 0
        %1293 = vperm.xlu0 %1292, %v1275
        %v1294 = vpop.permute.xlu0 %1293
        %1297 = vset.pattern.permute.xlu0 0
        %1298 = vperm.xlu0 %1297, %v1276
        %v1299 = vpop.permute.xlu0 %1298
        %1302 = vset.pattern.permute.xlu0 0
        %1303 = vperm.xlu0 %1302, %v1277
        %v1304 = vpop.permute.xlu0 %1303
        %1307 = vset.pattern.permute.xlu0 0
        %1308 = vperm.xlu0 %1307, %v1278
        %v1309 = vpop.permute.xlu0 %1308
        %1312 = vset.pattern.permute.xlu0 0
        %1313 = vperm.xlu0 %1312, %v1279
        %v1314 = vpop.permute.xlu0 %1313
        %1317 = vset.pattern.permute.xlu0 0
        %1318 = vperm.xlu0 %1317, %v1280
        %v1319 = vpop.permute.xlu0 %1318
        %v1329 = vunpack.c.l.b16 %v830
        %v1330 = vunpack.c.l.b16 %v831
        %v1331 = vunpack.c.l.b16 %v832
        %v1332 = vunpack.c.l.b16 %v833
        %v1333 = vunpack.c.l.b16 %v834
        %v1334 = vunpack.c.l.b16 %v835
        %v1335 = vunpack.c.l.b16 %v836
        %v1336 = vunpack.c.l.b16 %v837
        %v1337 = vpack.c.b16 %v1330, %v1329
        %v1338 = vpack.c.b16 %v1332, %v1331
        %v1339 = vpack.c.b16 %v1334, %v1333
        %v1340 = vpack.c.b16 %v1336, %v1335
        %v1349 = vunpack.c.l.b16 %v1265
        %v1350 = vunpack.c.l.b16 %v1266
        %v1351 = vunpack.c.l.b16 %v1267
        %v1352 = vunpack.c.l.b16 %v1268
        %v1353 = vunpack.c.l.b16 %v1269
        %v1354 = vunpack.c.l.b16 %v1270
        %v1355 = vunpack.c.l.b16 %v1271
        %v1356 = vunpack.c.l.b16 %v1272
        %v1357 = vpack.c.b16 %v1350, %v1349
        %v1358 = vpack.c.b16 %v1352, %v1351
        %v1359 = vpack.c.b16 %v1354, %v1353
        %v1360 = vpack.c.b16 %v1356, %v1355
        %v1366 = vsel %vm1199, %v1337, 0
        %v1369 = vsel %vm1199, %v1338, 0
        %v1372 = vsel %vm1199, %v1339, 0
        %v1375 = vsel %vm1199, %v1340, 0
        %1377 = vmatpush.bf16.msra.mxu0 0
        %1378 = vmatpush.bf16.msra.mxu0 0
        %1379 = vmatpush.bf16.msra.mxu0 0
        %1380 = vmatpush.bf16.msra.mxu0 0
        %1381 = vmatpush.bf16.msra.mxu0 %v1360
        %1382 = vmatpush.bf16.msra.mxu0 %v1359
        %1383 = vmatpush.bf16.msra.mxu0 %v1358
        %1384 = vmatpush.bf16.msra.mxu0 %v1357
        %1385 = vmatmul.bf16.gmra.mxu0 %v1366
        %v1386 = vpop.f32.mrf.mxu0
        %v1387 = vadd.f32 %v1284, %v1386
        %v1388 = vpop.f32.mrf.mxu0
        %v1389 = vadd.f32 %v1289, %v1388
        %1390 = vmatmul.bf16.gmra.mxu0 %v1369
        %v1391 = vpop.f32.mrf.mxu0
        %v1392 = vadd.f32 %v1294, %v1391
        %v1393 = vpop.f32.mrf.mxu0
        %v1394 = vadd.f32 %v1299, %v1393
        %1395 = vmatmul.bf16.gmra.mxu0 %v1372
        %v1396 = vpop.f32.mrf.mxu0
        %v1397 = vadd.f32 %v1304, %v1396
        %v1398 = vpop.f32.mrf.mxu0
        %v1399 = vadd.f32 %v1309, %v1398
        %1400 = vmatmul.bf16.gmra.mxu0 %v1375
        %v1401 = vpop.f32.mrf.mxu0
        %v1402 = vadd.f32 %v1314, %v1401
        %v1403 = vpop.f32.mrf.mxu0
        %v1404 = vadd.f32 %v1319, %v1403
        %1405 = vdwg.mxu0
        %v1406 = vsel %vm999, %v1387, 0.0
        %v1407 = vsel %vm999, %v1389, 0.0
        %v1408 = vsel %vm999, %v1392, 0.0
        %v1409 = vsel %vm999, %v1394, 0.0
        %v1410 = vsel %vm999, %v1397, 0.0
        %v1411 = vsel %vm999, %v1399, 0.0
        %v1412 = vsel %vm999, %v1402, 0.0
        %v1413 = vsel %vm999, %v1404, 0.0
        %v1414 = vpack.c.bf16 %v1406, %v1406
        %v1415 = vpack.c.bf16 %v1407, %v1407
        %v1416 = vpack.c.bf16 %v1408, %v1408
        %v1417 = vpack.c.bf16 %v1409, %v1409
        %v1418 = vpack.c.bf16 %v1410, %v1410
        %v1419 = vpack.c.bf16 %v1411, %v1411
        %v1420 = vpack.c.bf16 %v1412, %v1412
        %v1421 = vpack.c.bf16 %v1413, %v1413
        %1422 = vst [vmem:[%s748] sm:$0xf] %v1414
        %1423 = vst [vmem:[%s748 + $0x4] sm:$0xf] %v1415
        %1424 = vst [vmem:[%s748 + $0x8] sm:$0xf] %v1416
        %1425 = vst [vmem:[%s748 + $0xc] sm:$0xf] %v1417
        %1426 = vst [vmem:[%s748 + $0x10] sm:$0xf] %v1418
        %1427 = vst [vmem:[%s748 + $0x14] sm:$0xf] %v1419
        %1428 = vst [vmem:[%s748 + $0x18] sm:$0xf] %v1420
        %1429 = vst [vmem:[%s748 + $0x1c] sm:$0xf] %v1421
        %vm1430 = vcmp.eq.s32.totalorder %v839, 0
        %vm1431 = vcmp.eq.s32.totalorder %v839, 1
        %v1432 = vperm.slane %v888, 0
        %v1433 = vperm.slane %v912, 0
        %v1434 = vsel %vm1431, %v1432, %v1433
        %v1435 = vperm.slane %v864, 0
        %v1436 = vsel %vm1430, %v1435, %v1434
        %v1437 = vsel %vm999, %v1436, 0.0
        %1438 = vst [vmem:[%s812] sm:$0x7] %v1437
        %v1439 = vld [vmem:[%s768] sm:$0x1]
        %v1440 = vsel %vm920, %v1439, 4294967295
        %v1441 = vperm.slane %v1440, 0
        %v1442 = vsel %vm1430, %v1441, %v998
        %1443 = vst [vmem:[%s755] sm:$0x3] %v1442
        %p1444 = scmp.lt.s32.totalorder %s43, 1
        %s1445 = scalar_select %p1444, %s43, 1
        %p1446 = scmp.lt.s32.totalorder %s44, 0
        %s1447 = scalar_select %p1446, %s44, 0
        %s1448 = sadd.s32 %s1447, %s1445
        %s1449 = smul.addr %s1448, 4
        %s1450 = scalar_lea.vmem %s12, %s1449
        %s1451 = sand.u32 %s388, 1
        %s1452 = scalar_lea.sflag [#allocation3], %s1451
        %s1453 = sand.u32 %s388, 1
        %s1454 = smul.addr %s1453, 16
        %s1455 = scalar_lea.vmem [#allocation5], %s1454
        %s1456 = sand.u32 %s39, 1
        %s1457 = scalar_lea.sflag [#allocation7], %s1456
        %s1458 = sand.u32 %s416, 1
        %s1459 = smul.addr %s1458, 16
        %s1460 = scalar_lea.vmem [#allocation6], %s1459
        %s1461 = sand.u32 %s39, 1
        %s1462 = scalar_lea.sflag [#allocation7], %s1461
        %s1463 = sand.u32 %s444, 1
        %s1464 = smul.addr %s1463, 32
        %s1465 = scalar_lea.vmem [#allocation8], %s1464
        %s1466 = sand.u32 %s39, 1
        %s1467 = scalar_lea.sflag [#allocation10], %s1466
        %s1468 = sand.u32 %s472, 1
        %s1469 = smul.addr %s1468, 32
        %s1470 = scalar_lea.vmem [#allocation9], %s1469
        %s1471 = sand.u32 %s39, 1
        %s1472 = scalar_lea.sflag [#allocation10], %s1471
        %s1473 = sand.u32 %s500, 1
        %s1474 = smul.addr %s1473, 2
        %s1475 = scalar_lea.vmem [#allocation11], %s1474
        // Predicated region
        $region73: #{tpu_custom_call.1} parent=67 // pred_check
          %p1476 = pneg %p370
        $region74: #{tpu_custom_call.1} parent=67 // pred_check_branch
          %1478 = sbr.rel (%p1476) target = $region76
        $region75: #{tpu_custom_call.1} parent=67 // pred_region
          _
        $region76: #{tpu_custom_call.1} parent=67 // pred_fallthru
          _
        // Predicated region
        $region77: #{tpu_custom_call.1} parent=67 // pred_check
          %p1479 = pneg %p398
        $region78: #{tpu_custom_call.1} parent=67 // pred_check_branch
          %1481 = sbr.rel (%p1479) target = $region80
        $region79: #{tpu_custom_call.1} parent=67 // pred_region
          %1483 = vsyncadd %s1452, 0
          %s1484 = smul.addr %s43, 4
          %s1485 = sadd.s32 %s44, %s1484
          %s1486 = smul.addr %s1485, 4
          %s1487 = scalar_lea.hbm %s13, %s1486
          %s1488 = sshll.u32 %s1455, 4
          %s1489 = int_to_ptr.vmem [resolvable:$true] %s1488
          %s1490 = sshll.u32 %s1487, 4
          %s1491 = int_to_ptr.hbm [resolvable:$true] %s1490
          %1496 = dma.vmem_to_hbm [thread:$0]  %s1489, 256, %s1491, %s1452, 64, 64, 4
        $region80: #{tpu_custom_call.1} parent=67 // pred_fallthru
          _
        // Predicated region
        $region81: #{tpu_custom_call.1} parent=67 // pred_check
          %p1497 = pneg %p426
        $region82: #{tpu_custom_call.1} parent=67 // pred_check_branch
          %1499 = sbr.rel (%p1497) target = $region84
        $region83: #{tpu_custom_call.1} parent=67 // pred_region
          %1501 = vsyncadd %s1457, 0
          %s1502 = smul.addr %s43, 4
          %s1503 = sadd.s32 %s44, %s1502
          %s1504 = smul.addr %s1503, 4
          %s1505 = scalar_lea.hbm %s14, %s1504
          %s1506 = sshll.u32 %s1460, 4
          %s1507 = int_to_ptr.vmem [resolvable:$true] %s1506
          %s1508 = sshll.u32 %s1505, 4
          %s1509 = int_to_ptr.hbm [resolvable:$true] %s1508
          %1514 = dma.vmem_to_hbm [thread:$0]  %s1507, 256, %s1509, %s1457, 64, 64, 4
        $region84: #{tpu_custom_call.1} parent=67 // pred_fallthru
          _
        // Predicated region
        $region85: #{tpu_custom_call.1} parent=67 // pred_check
          %p1515 = pneg %p454
        $region86: #{tpu_custom_call.1} parent=67 // pred_check_branch
          %1517 = sbr.rel (%p1515) target = $region88
        $region87: #{tpu_custom_call.1} parent=67 // pred_region
          %1519 = vsyncadd %s1462, 0
          %s1520 = smul.addr %s43, 8
          %s1521 = sadd.s32 %s44, %s1520
          %s1522 = smul.addr %s1521, 4
          %s1523 = scalar_lea.hbm %s15, %s1522
          %s1524 = sshll.u32 %s1465, 4
          %s1525 = int_to_ptr.vmem [resolvable:$true] %s1524
          %s1526 = sshll.u32 %s1523, 4
          %s1527 = int_to_ptr.hbm [resolvable:$true] %s1526
          %1532 = dma.vmem_to_hbm [thread:$0]  %s1525, 512, %s1527, %s1462, 64, 64, 4
        $region88: #{tpu_custom_call.1} parent=67 // pred_fallthru
          _
        // Predicated region
        $region89: #{tpu_custom_call.1} parent=67 // pred_check
          %p1533 = pneg %p482
        $region90: #{tpu_custom_call.1} parent=67 // pred_check_branch
          %1535 = sbr.rel (%p1533) target = $region92
        $region91: #{tpu_custom_call.1} parent=67 // pred_region
          %1537 = vsyncadd %s1467, 0
          %s1538 = smul.addr %s43, 8
          %s1539 = sadd.s32 %s44, %s1538
          %s1540 = smul.addr %s1539, 4
          %s1541 = scalar_lea.hbm %s16, %s1540
          %s1542 = sshll.u32 %s1470, 4
          %s1543 = int_to_ptr.vmem [resolvable:$true] %s1542
          %s1544 = sshll.u32 %s1541, 4
          %s1545 = int_to_ptr.hbm [resolvable:$true] %s1544
          %1550 = dma.vmem_to_hbm [thread:$0]  %s1543, 512, %s1545, %s1467, 64, 64, 4
        $region92: #{tpu_custom_call.1} parent=67 // pred_fallthru
          _
        // Predicated region
        $region93: #{tpu_custom_call.1} parent=67 // pred_check
          %p1551 = pneg %p510
        $region94: #{tpu_custom_call.1} parent=67 // pred_check_branch
          %1553 = sbr.rel (%p1551) target = $region96
        $region95: #{tpu_custom_call.1} parent=67 // pred_region
          %1555 = vsyncadd %s1472, 0
          %s1556 = sadd.s32 %s44, %s43
          %s1557 = smul.addr %s1556, 2
          %s1558 = scalar_lea.hbm %s17, %s1557
          %s1560 = sshll.u32 %s1475, 4
          %s1561 = int_to_ptr.vmem [resolvable:$true] %s1560
          %s1562 = sshll.u32 %s1558, 4
          %s1563 = int_to_ptr.hbm [resolvable:$true] %s1562
          %1565 = dma.vmem_to_hbm [thread:$0]  %s1561, 32, %s1563, %s1472
        $region96: #{tpu_custom_call.1} parent=67 // pred_fallthru
          _
      $region68: #{tpu_custom_call.1} parent=5 // pred_fallthru
        _
      %p1566 = scmp.le.s32.totalorder 2, %s34
      // Predicated region
      $region97: #{tpu_custom_call.1} parent=5 // pred_check
        %p1567 = pneg %p1566
      $region98: #{tpu_custom_call.1} parent=5 // pred_check_branch
        %1569 = sbr.rel (%p1567) target = $region100
      $region99: #{tpu_custom_call.1} parent=5 // pred_region
        %s1570 = ssub.s32 %s34, 2
        // Predicated region
        $region101: #{tpu_custom_call.1} parent=99 // pred_check
          %p1571 = pneg %p376
        $region102: #{tpu_custom_call.1} parent=99 // pred_check_branch
          %1573 = sbr.rel (%p1571) target = $region104
        $region103: #{tpu_custom_call.1} parent=99 // pred_region
          %p1574 = scmp.lt.s32.totalorder %s45, 1
          %s1575 = scalar_select %p1574, %s45, 1
          %p1576 = scmp.lt.s32.totalorder %s46, 0
          %s1577 = scalar_select %p1576, %s46, 0
          %s1578 = sadd.s32 %s1577, %s1575
          %s1579 = smul.addr %s1578, 4
          %s1580 = scalar_lea.vmem %s12, %s1579
        $region104: #{tpu_custom_call.1} parent=99 // pred_fallthru
          _
        // Predicated region
        $region105: #{tpu_custom_call.1} parent=99 // pred_check
          %p1581 = pneg %p404
        $region106: #{tpu_custom_call.1} parent=99 // pred_check_branch
          %1583 = sbr.rel (%p1581) target = $region108
        $region107: #{tpu_custom_call.1} parent=99 // pred_region
          %s1584 = sand.u32 %s389, 1
          %s1585 = scalar_lea.sflag [#allocation3], %s1584
          %s1586 = sand.u32 %s389, 1
          %s1587 = smul.addr %s1586, 16
          %s1588 = scalar_lea.vmem [#allocation5], %s1587
          %1590 = dma.done %s1585, 256
        $region108: #{tpu_custom_call.1} parent=99 // pred_fallthru
          _
        // Predicated region
        $region109: #{tpu_custom_call.1} parent=99 // pred_check
          %p1591 = pneg %p432
        $region110: #{tpu_custom_call.1} parent=99 // pred_check_branch
          %1593 = sbr.rel (%p1591) target = $region112
        $region111: #{tpu_custom_call.1} parent=99 // pred_region
          %s1594 = sand.u32 %s40, 1
          %s1595 = scalar_lea.sflag [#allocation7], %s1594
          %s1596 = sand.u32 %s417, 1
          %s1597 = smul.addr %s1596, 16
          %s1598 = scalar_lea.vmem [#allocation6], %s1597
          %1600 = dma.done %s1595, 256
        $region112: #{tpu_custom_call.1} parent=99 // pred_fallthru
          _
        // Predicated region
        $region113: #{tpu_custom_call.1} parent=99 // pred_check
          %p1601 = pneg %p460
        $region114: #{tpu_custom_call.1} parent=99 // pred_check_branch
          %1603 = sbr.rel (%p1601) target = $region116
        $region115: #{tpu_custom_call.1} parent=99 // pred_region
          %s1604 = sand.u32 %s40, 1
          %s1605 = scalar_lea.sflag [#allocation7], %s1604
          %s1606 = sand.u32 %s445, 1
          %s1607 = smul.addr %s1606, 32
          %s1608 = scalar_lea.vmem [#allocation8], %s1607
          %1610 = dma.done %s1605, 512
        $region116: #{tpu_custom_call.1} parent=99 // pred_fallthru
          _
        // Predicated region
        $region117: #{tpu_custom_call.1} parent=99 // pred_check
          %p1611 = pneg %p488
        $region118: #{tpu_custom_call.1} parent=99 // pred_check_branch
          %1613 = sbr.rel (%p1611) target = $region120
        $region119: #{tpu_custom_call.1} parent=99 // pred_region
          %s1614 = sand.u32 %s40, 1
          %s1615 = scalar_lea.sflag [#allocation10], %s1614
          %s1616 = sand.u32 %s473, 1
          %s1617 = smul.addr %s1616, 32
          %s1618 = scalar_lea.vmem [#allocation9], %s1617
          %1620 = dma.done %s1615, 512
        $region120: #{tpu_custom_call.1} parent=99 // pred_fallthru
          _
        // Predicated region
        $region121: #{tpu_custom_call.1} parent=99 // pred_check
          %p1621 = pneg %p516
        $region122: #{tpu_custom_call.1} parent=99 // pred_check_branch
          %1623 = sbr.rel (%p1621) target = $region124
        $region123: #{tpu_custom_call.1} parent=99 // pred_region
          %s1624 = sand.u32 %s40, 1
          %s1625 = scalar_lea.sflag [#allocation10], %s1624
          %s1626 = sand.u32 %s501, 1
          %s1627 = smul.addr %s1626, 2
          %s1628 = scalar_lea.vmem [#allocation11], %s1627
          %1630 = dma.done %s1625, 32
        $region124: #{tpu_custom_call.1} parent=99 // pred_fallthru
          _
      $region100: #{tpu_custom_call.1} parent=5 // pred_fallthru
        _
    $region6: #{tpu_custom_call.1} parent=1 // loop_footer
      %s38 = sadd.s32 1, %s34
    $region7: #{tpu_custom_call.1} parent=1 // loop_footer_branch
      %33 = sbr.rel target = $region3
    $region8: #{tpu_custom_call.1} parent=1 // loop_exit
      _
    %1631 = vsyncpa [#allocation3], 1
    %s1632 = scalar_lea.sflag [#allocation3], 1
    %1633 = vsyncpa %s1632, 1
    %1634 = vsyncpa [#allocation7], 1
    %s1635 = scalar_lea.sflag [#allocation7], 1
    %1636 = vsyncpa %s1635, 1
    %1637 = vsyncpa [#allocation10], 1
    %s1638 = scalar_lea.sflag [#allocation10], 1
    %1639 = vsyncpa %s1638, 1
    %1640 = vsyncpa [#allocation4], 1
    %s1641 = scalar_lea.sflag [#allocation4], 1
    %1642 = vsyncpa %s1641, 1

</llo_original>
